<compile_context>
chip_gen: v7x
topology: tpu7x:2x2x1
jax: 0.10.0
libtpu: 0.0.40
codegen_flags: <defaults>
</compile_context>

<pallas_src>
from functools import partial

import jax
import jax.numpy as jnp
from jax.experimental import pallas as pl
from jax.experimental.pallas import tpu as pltpu


# --------------------------- fused attention block -------------------------- #

def _attn_block_kernel(x_ref, wqkv_ref, bqkv_ref, wo_ref, bo_ref, g_ref, b_ref,
                       o_ref, ctx_ref, *, nhead, scale, eps):
    """One batch element: QKV proj -> per-head softmax(QK^T)V -> O proj -> +residual -> LN1."""
    x = x_ref[0]                                                   # (T, E) f32 residual copy
    E = x.shape[-1]
    Dh = E // nhead

    # Fused Q/K/V projection: one MXU matmul with bf16 operands, f32 accumulation.
    qkv = jnp.dot(x.astype(jnp.bfloat16), wqkv_ref[...],
                  preferred_element_type=jnp.float32) + bqkv_ref[...]          # (T, 3E) f32

    # Per-head attention.  Each ctx_h is written into the (T, E) VMEM slab at lane
    # offset h*Dh; the output projection is then a single K=E GEMM below (equivalent
    # to concat(ctx_h) @ Wo).  Per-head temporaries die every iteration.
    for h in range(nhead):
        qh = (qkv[:, h * Dh:(h + 1) * Dh] * scale).astype(jnp.bfloat16)        # (T, Dh)
        kh = qkv[:, E + h * Dh:E + (h + 1) * Dh].astype(jnp.bfloat16)          # (T, Dh)
        vh = qkv[:, 2 * E + h * Dh:2 * E + (h + 1) * Dh].astype(jnp.bfloat16)  # (T, Dh)
        # scores = qh @ kh^T via dot_general contraction on the last dim (no XLU transpose).
        s = jax.lax.dot_general(qh, kh, (((1,), (1,)), ((), ())),
                                preferred_element_type=jnp.float32)            # (T, T)
        m = jnp.max(s, axis=-1, keepdims=True)
        p = jnp.exp(s - m)
        l = jnp.sum(p, axis=-1, keepdims=True)
        ctx_h = jnp.dot(p.astype(jnp.bfloat16), vh,
                        preferred_element_type=jnp.float32)                    # (T, Dh)
        ctx_ref[:, h * Dh:(h + 1) * Dh] = ctx_h / l            # exact softmax normalization
    # TODO(synk): flash-style KV tiling for realistic sequence lengths (see header).

    # Single K=E output projection on the full context slab.
    attn = jnp.dot(ctx_ref[...].astype(jnp.bfloat16), wo_ref[...],
                   preferred_element_type=jnp.float32) + bo_ref[...]           # (T, E)

    # Residual + LayerNorm1 fused into the epilogue; statistics in f32.
    y = x + attn
    mean = jnp.mean(y, axis=-1, keepdims=True)
    yc = y - mean
    var = jnp.mean(yc * yc, axis=-1, keepdims=True)
    y = yc * jax.lax.rsqrt(var + eps) * g_ref[...] + b_ref[...]
    o_ref[0] = y.astype(o_ref.dtype)                            # bf16 handoff to the FFN kernel


def attention_block(x, wqkv, bqkv, wo, bo, gamma, beta, nhead, eps=1e-5):
    B, T, E = x.shape
    Dh = E // nhead
    scale = 1.0 / float(Dh) ** 0.5

    # bf16 weights (bf16-native MXU on v5e/v6e/v7x, half the weight HBM/VMEM footprint);
    # biases / LN params stay f32.
    wqkv_bf = wqkv.astype(jnp.bfloat16)
    wo_bf = wo.astype(jnp.bfloat16)
    bqkv2 = bqkv.reshape(1, 3 * E)
    bo2 = bo.reshape(1, E)
    g2 = gamma.reshape(1, E)
    bt2 = beta.reshape(1, E)

    # Grid-invariant parameters: whole-array VMEM residency = one copy, no double buffering.
    param_spec = pl.BlockSpec(memory_space=pltpu.MemorySpace.VMEM)

    # Explicit VMEM budget: resident params + double-buffered activation tiles + headroom.
    resident = (wqkv_bf.size + wo_bf.size) * 2                      # bf16 params
    resident += (bqkv2.size + bo2.size + g2.size + bt2.size) * 4    # f32 params
    resident += 2 * T * E * 4                                       # x block (f32, 2 bufs)
    resident += 2 * T * E * 2                                       # out block (bf16, 2 bufs)
    resident += T * E * 4                                           # ctx scratch (f32)
    vmem_limit = int(min(max(resident + (8 << 20), 32 << 20), 64 << 20))

    return pl.pallas_call(
        partial(_attn_block_kernel, nhead=nhead, scale=scale, eps=eps),
        out_shape=jax.ShapeDtypeStruct((B, T, E), jnp.bfloat16),
        grid=(B,),
        in_specs=[
            pl.BlockSpec((1, T, E), lambda b: (b, 0, 0)),
            param_spec,   # wqkv
            param_spec,   # bqkv
            param_spec,   # wo
            param_spec,   # bo
            param_spec,   # norm1 gamma
            param_spec,   # norm1 beta
        ],
        out_specs=pl.BlockSpec((1, T, E), lambda b: (b, 0, 0)),
        scratch_shapes=[pltpu.VMEM((T, E), jnp.float32)],
        compiler_params=pltpu.CompilerParams(
            dimension_semantics=("parallel",),
            vmem_limit_bytes=vmem_limit),
    )(x, wqkv_bf, bqkv2, wo_bf, bo2, g2, bt2)


# ------------------------------ fused FFN block ------------------------------ #

def _ffn_block_kernel(x_ref, w1_ref, b1_ref, w2_ref, b2_ref, g_ref, b_ref, o_ref, *, eps):
    # x_ref: (tm, E) bf16 row tile (post-LN1 activations).  Linear1+ReLU -> Linear2 ->
    # residual -> LayerNorm2, all fused; bf16 MXU operands, f32 accumulation and stats.
    x_bf = x_ref[...]
    h = jnp.dot(x_bf, w1_ref[...], preferred_element_type=jnp.float32) + b1_ref[...]
    h = jnp.maximum(h, 0.0)                                         # ReLU
    ff = jnp.dot(h.astype(jnp.bfloat16), w2_ref[...],
                 preferred_element_type=jnp.float32) + b2_ref[...]
    y = x_bf.astype(jnp.float32) + ff
    mean = jnp.mean(y, axis=-1, keepdims=True)
    yc = y - mean
    var = jnp.mean(yc * yc, axis=-1, keepdims=True)
    y = yc * jax.lax.rsqrt(var + eps) * g_ref[...] + b_ref[...]
    o_ref[...] = y.astype(o_ref.dtype)


def _pick_row_tile(M):
    # Fixed VMEM-derived cap (<=512 rows, multiple of 8) giving the 'parallel' grid many
    # steps, instead of scaling the tile with B*T.
    for cand in (512, 256, 128, 64, 32, 16, 8):
        if M % cand == 0:
            return cand
    return M  # TODO(synk): pad ragged row counts to a multiple of 8 instead of one big block.


def ffn_block(x2d, w1, b1, w2, b2, gamma, beta, eps=1e-5):
    M, E = x2d.shape
    FF = w1.shape[1]
    tm = _pick_row_tile(M)
    grid_m = M // tm

    w1_bf = w1.astype(jnp.bfloat16)
    w2_bf = w2.astype(jnp.bfloat16)
    b1r = b1.reshape(1, FF)
    b2r = b2.reshape(1, E)
    g2 = gamma.reshape(1, E)
    bt2 = beta.reshape(1, E)

    param_spec = pl.BlockSpec(memory_space=pltpu.MemorySpace.VMEM)

    resident = (w1_bf.size + w2_bf.size) * 2                        # bf16 weights, single copy
    resident += (b1r.size + b2r.size + g2.size + bt2.size) * 4
    resident += 2 * tm * E * 2                                      # x tile (bf16, 2 bufs)
    resident += 2 * tm * E * 4                                      # out tile (f32, 2 bufs)
    resident += 2 * tm * FF * 4                                     # hidden activations headroom
    vmem_limit = int(min(max(resident + (8 << 20), 32 << 20), 64 << 20))

    # TODO(synk): stream w1/w2 over an inner 'arbitrary' FF/K grid axis at realistic E/FF.
    return pl.pallas_call(
        partial(_ffn_block_kernel, eps=eps),
        out_shape=jax.ShapeDtypeStruct((M, E), jnp.float32),
        grid=(grid_m,),
        in_specs=[
            pl.BlockSpec((tm, E), lambda i: (i, 0)),
            param_spec,   # w1
            param_spec,   # b1
            param_spec,   # w2
            param_spec,   # b2
            param_spec,   # norm2 gamma
            param_spec,   # norm2 beta
        ],
        out_specs=pl.BlockSpec((tm, E), lambda i: (i, 0)),
        compiler_params=pltpu.CompilerParams(
            dimension_semantics=("parallel",),
            vmem_limit_bytes=vmem_limit),
    )(x2d, w1_bf, b1r, w2_bf, b2r, g2, bt2)


# ----------------------------- layer composition ----------------------------- #

def encoder_layer_fwd(x, p, nhead):
    B, T, E = x.shape
    a = attention_block(x, p["wqkv"], p["bqkv"], p["wo"], p["bo"],
                        p["norm1_g"], p["norm1_b"], nhead)          # bf16 (B, T, E) handoff
    y = ffn_block(a.reshape(B * T, E), p["w1"], p["b1"], p["w2"], p["b2"],
                  p["norm2_g"], p["norm2_b"])
    return y.reshape(B, T, E)


# ----------------------------- pure-JAX reference ---------------------------- #

def _ref_forward(x, p, nhead, eps=1e-5):
    B, T, E = x.shape
    Dh = E // nhead
    scale = 1.0 / float(Dh) ** 0.5
    qkv = x @ p["wqkv"] + p["bqkv"]
    q, k, v = jnp.split(qkv, 3, axis=-1)
    q = (q * scale).reshape(B, T, nhead, Dh).transpose(0, 2, 1, 3)
    k = k.reshape(B, T, nhead, Dh).transpose(0, 2, 1, 3)
    v = v.reshape(B, T, nhead, Dh).transpose(0, 2, 1, 3)
    s = jnp.einsum("bhtd,bhsd->bhts", q, k)
    pr = jax.nn.softmax(s, axis=-1)
    ctx = jnp.einsum("bhts,bhsd->bhtd", pr, v).transpose(0, 2, 1, 3).reshape(B, T, E)
    attn = ctx @ p["wo"] + p["bo"]

    def ln(z, g, b):
        m = z.mean(-1, keepdims=True)
        var = ((z - m) ** 2).mean(-1, keepdims=True)
        return (z - m) / jnp.sqrt(var + eps) * g + b

    y = ln(x + attn, p["norm1_g"], p["norm1_b"])
    h = jnp.maximum(y @ p["w1"] + p["b1"], 0.0)
    ff = h @ p["w2"] + p["b2"]
    return ln(y + ff, p["norm2_g"], p["norm2_b"])


# ------------------------------ parameter init ------------------------------- #

def init_params(key, E, FF):
    ks = jax.random.split(key, 8)
    s = 0.05
    return {
        "wqkv": s * jax.random.normal(ks[0], (E, 3 * E), jnp.float32),
        "bqkv": s * jax.random.normal(ks[1], (3 * E,), jnp.float32),
        "wo": s * jax.random.normal(ks[2], (E, E), jnp.float32),
        "bo": s * jax.random.normal(ks[3], (E,), jnp.float32),
        "w1": s * jax.random.normal(ks[4], (E, FF), jnp.float32),
        "b1": s * jax.random.normal(ks[5], (FF,), jnp.float32),
        "w2": s * jax.random.normal(ks[6], (FF, E), jnp.float32),
        "b2": s * jax.random.normal(ks[7], (E,), jnp.float32),
        "norm1_g": jnp.ones((E,), jnp.float32),
        "norm1_b": jnp.zeros((E,), jnp.float32),
        "norm2_g": jnp.ones((E,), jnp.float32),
        "norm2_b": jnp.zeros((E,), jnp.float32),
    }


# ----------------------------------- main ------------------------------------ #

if __name__ == "__main__":
    B, T = 2, 8            # batch, seq_len
    E, H, FF = 32, 4, 64   # d_model, heads, d_ff

    root = jax.random.PRNGKey(0)
    kx, kp = jax.random.split(root)
    x = jax.random.normal(kx, (B, T, E), jnp.float32)
    params = init_params(kp, E, FF)

    fwd = jax.jit(partial(encoder_layer_fwd, nhead=H))
    out = jax.block_until_ready(fwd(x, params))

    assert out.shape == (B, T, E)
    assert bool(jnp.all(jnp.isfinite(out)))

    # Tolerance loosened slightly (2e-2) to cover bf16 MXU operands / bf16 inter-kernel
    # handoff vs. the all-f32 pure-JAX reference.
    ref = _ref_forward(x, params, H)
    assert bool(jnp.allclose(out, ref, atol=2e-2, rtol=2e-2)), "mismatch vs. pure-JAX reference"

    print("KERNEL_OK")
</pallas_src>

<mosaic_0001>
module attributes {stable_mosaic.version = 11 : i64} {
  func.func @_attn_block_kernel(%arg0: i32, %arg1: memref<1x8x32xf32, #tpu.memory_space<vmem>>, %arg2: memref<32x96xbf16, #tpu.memory_space<vmem>>, %arg3: memref<1x96xf32, #tpu.memory_space<vmem>>, %arg4: memref<32x32xbf16, #tpu.memory_space<vmem>>, %arg5: memref<1x32xf32, #tpu.memory_space<vmem>>, %arg6: memref<1x32xf32, #tpu.memory_space<vmem>>, %arg7: memref<1x32xf32, #tpu.memory_space<vmem>>, %arg8: memref<1x8x32xbf16, #tpu.memory_space<vmem>>, %arg9: memref<8x32xf32, #tpu.memory_space<vmem>>) attributes {dimension_semantics = [#tpu.dimension_semantics<parallel>], iteration_bounds = array<i64: 2>, scalar_prefetch = 0 : i64, scratch_operands = 1 : i64, tpu.core_type = #tpu.core_type<tc>, window_params = [{transform_indices = @transform_0, window_bounds = array<i64: 1, 8, 32>}, {pipeline_mode = #tpu.pipeline_mode<synchronous>, transform_indices = @transform_1, window_bounds = array<i64: 32, 96>}, {pipeline_mode = #tpu.pipeline_mode<synchronous>, transform_indices = @transform_2, window_bounds = array<i64: 1, 96>}, {pipeline_mode = #tpu.pipeline_mode<synchronous>, transform_indices = @transform_3, window_bounds = array<i64: 32, 32>}, {pipeline_mode = #tpu.pipeline_mode<synchronous>, transform_indices = @transform_4, window_bounds = array<i64: 1, 32>}, {pipeline_mode = #tpu.pipeline_mode<synchronous>, transform_indices = @transform_5, window_bounds = array<i64: 1, 32>}, {pipeline_mode = #tpu.pipeline_mode<synchronous>, transform_indices = @transform_6, window_bounds = array<i64: 1, 32>}, {transform_indices = @transform_7, window_bounds = array<i64: 1, 8, 32>}]} {
    %c0 = arith.constant 0 : index
    %c0_0 = arith.constant 0 : index
    %c0_1 = arith.constant 0 : index
    %0 = vector.load %arg1[%c0, %c0_0, %c0_1] : memref<1x8x32xf32, #tpu.memory_space<vmem>>, vector<1x8x32xf32>
    %1 = vector.shape_cast %0 : vector<1x8x32xf32> to vector<8x32xf32>
    %2 = arith.truncf %1 : vector<8x32xf32> to vector<8x32xbf16>
    %c0_2 = arith.constant 0 : index
    %c0_3 = arith.constant 0 : index
    %3 = vector.load %arg2[%c0_2, %c0_3] : memref<32x96xbf16, #tpu.memory_space<vmem>>, vector<32x96xbf16>
    %cst = arith.constant dense<0.000000e+00> : vector<8x96xf32>
    %4 = tpu.matmul %2, %3, %cst {dimension_numbers = #tpu.dot_dimension_numbers<[1], [0], [0], [1], [0, 0, 1, 1], [], []>} : vector<8x32xbf16>, vector<32x96xbf16>, vector<8x96xf32> -> vector<8x96xf32>
    %c0_4 = arith.constant 0 : index
    %c0_5 = arith.constant 0 : index
    %5 = vector.load %arg3[%c0_4, %c0_5] : memref<1x96xf32, #tpu.memory_space<vmem>>, vector<1x96xf32>
    %6 = vector.broadcast %5 : vector<1x96xf32> to vector<8x96xf32>
    %7 = arith.addf %4, %6 : vector<8x96xf32>
    %8 = vector.extract_strided_slice %7 {offsets = [0, 0], sizes = [8, 8], strides = [1, 1]} : vector<8x96xf32> to vector<8x8xf32>
    %cst_6 = arith.constant 0.353553385 : f32
    %9 = vector.broadcast %cst_6 : f32 to vector<8x8xf32>
    %10 = arith.mulf %8, %9 : vector<8x8xf32>
    %11 = arith.truncf %10 : vector<8x8xf32> to vector<8x8xbf16>
    %12 = vector.extract_strided_slice %7 {offsets = [0, 32], sizes = [8, 8], strides = [1, 1]} : vector<8x96xf32> to vector<8x8xf32>
    %13 = arith.truncf %12 : vector<8x8xf32> to vector<8x8xbf16>
    %14 = vector.extract_strided_slice %7 {offsets = [0, 64], sizes = [8, 8], strides = [1, 1]} : vector<8x96xf32> to vector<8x8xf32>
    %15 = arith.truncf %14 : vector<8x8xf32> to vector<8x8xbf16>
    %cst_7 = arith.constant dense<0.000000e+00> : vector<8x8xf32>
    %16 = tpu.matmul %11, %13, %cst_7 {dimension_numbers = #tpu.dot_dimension_numbers<[1], [1], [0], [0], [0, 0, 1, 0], [], []>} : vector<8x8xbf16>, vector<8x8xbf16>, vector<8x8xf32> -> vector<8x8xf32>
    %cst_8 = arith.constant dense<0xFF800000> : vector<8xf32>
    %17 = vector.multi_reduction <maximumf>, %16, %cst_8 [1] : vector<8x8xf32> to vector<8xf32>
    %18 = vector.shape_cast %17 : vector<8xf32> to vector<8x1xf32>
    %19 = vector.broadcast %18 : vector<8x1xf32> to vector<8x8xf32>
    %20 = arith.subf %16, %19 : vector<8x8xf32>
    %21 = math.exp %20 : vector<8x8xf32>
    %cst_9 = arith.constant dense<0.000000e+00> : vector<8xf32>
    %22 = vector.multi_reduction <add>, %21, %cst_9 [1] : vector<8x8xf32> to vector<8xf32>
    %23 = vector.shape_cast %22 : vector<8xf32> to vector<8x1xf32>
    %24 = arith.truncf %21 : vector<8x8xf32> to vector<8x8xbf16>
    %cst_10 = arith.constant dense<0.000000e+00> : vector<8x8xf32>
    %25 = tpu.matmul %24, %15, %cst_10 {dimension_numbers = #tpu.dot_dimension_numbers<[1], [0], [0], [1], [0, 0, 1, 1], [], []>} : vector<8x8xbf16>, vector<8x8xbf16>, vector<8x8xf32> -> vector<8x8xf32>
    %26 = vector.broadcast %23 : vector<8x1xf32> to vector<8x8xf32>
    %27 = arith.divf %25, %26 : vector<8x8xf32>
    %c0_11 = arith.constant 0 : index
    %c0_12 = arith.constant 0 : index
    %28 = vector.load %arg9[%c0_11, %c0_12] : memref<8x32xf32, #tpu.memory_space<vmem>>, vector<8x8xf32>
    tpu.vector_store %arg9[%c0_11, %c0_12], %27 {strides = array<i32>} : memref<8x32xf32, #tpu.memory_space<vmem>>, vector<8x8xf32>,
    %29 = vector.extract_strided_slice %7 {offsets = [0, 8], sizes = [8, 8], strides = [1, 1]} : vector<8x96xf32> to vector<8x8xf32>
    %cst_13 = arith.constant 0.353553385 : f32
    %30 = vector.broadcast %cst_13 : f32 to vector<8x8xf32>
    %31 = arith.mulf %29, %30 : vector<8x8xf32>
    %32 = arith.truncf %31 : vector<8x8xf32> to vector<8x8xbf16>
    %33 = vector.extract_strided_slice %7 {offsets = [0, 40], sizes = [8, 8], strides = [1, 1]} : vector<8x96xf32> to vector<8x8xf32>
    %34 = arith.truncf %33 : vector<8x8xf32> to vector<8x8xbf16>
    %35 = vector.extract_strided_slice %7 {offsets = [0, 72], sizes = [8, 8], strides = [1, 1]} : vector<8x96xf32> to vector<8x8xf32>
    %36 = arith.truncf %35 : vector<8x8xf32> to vector<8x8xbf16>
    %cst_14 = arith.constant dense<0.000000e+00> : vector<8x8xf32>
    %37 = tpu.matmul %32, %34, %cst_14 {dimension_numbers = #tpu.dot_dimension_numbers<[1], [1], [0], [0], [0, 0, 1, 0], [], []>} : vector<8x8xbf16>, vector<8x8xbf16>, vector<8x8xf32> -> vector<8x8xf32>
    %cst_15 = arith.constant dense<0xFF800000> : vector<8xf32>
    %38 = vector.multi_reduction <maximumf>, %37, %cst_15 [1] : vector<8x8xf32> to vector<8xf32>
    %39 = vector.shape_cast %38 : vector<8xf32> to vector<8x1xf32>
    %40 = vector.broadcast %39 : vector<8x1xf32> to vector<8x8xf32>
    %41 = arith.subf %37, %40 : vector<8x8xf32>
    %42 = math.exp %41 : vector<8x8xf32>
    %cst_16 = arith.constant dense<0.000000e+00> : vector<8xf32>
    %43 = vector.multi_reduction <add>, %42, %cst_16 [1] : vector<8x8xf32> to vector<8xf32>
    %44 = vector.shape_cast %43 : vector<8xf32> to vector<8x1xf32>
    %45 = arith.truncf %42 : vector<8x8xf32> to vector<8x8xbf16>
    %cst_17 = arith.constant dense<0.000000e+00> : vector<8x8xf32>
    %46 = tpu.matmul %45, %36, %cst_17 {dimension_numbers = #tpu.dot_dimension_numbers<[1], [0], [0], [1], [0, 0, 1, 1], [], []>} : vector<8x8xbf16>, vector<8x8xbf16>, vector<8x8xf32> -> vector<8x8xf32>
    %47 = vector.broadcast %44 : vector<8x1xf32> to vector<8x8xf32>
    %48 = arith.divf %46, %47 : vector<8x8xf32>
    %c0_18 = arith.constant 0 : index
    %c8 = arith.constant 8 : index
    %49 = vector.load %arg9[%c0_18, %c8] : memref<8x32xf32, #tpu.memory_space<vmem>>, vector<8x8xf32>
    tpu.vector_store %arg9[%c0_18, %c8], %48 {strides = array<i32>} : memref<8x32xf32, #tpu.memory_space<vmem>>, vector<8x8xf32>,
    %50 = vector.extract_strided_slice %7 {offsets = [0, 16], sizes = [8, 8], strides = [1, 1]} : vector<8x96xf32> to vector<8x8xf32>
    %cst_19 = arith.constant 0.353553385 : f32
    %51 = vector.broadcast %cst_19 : f32 to vector<8x8xf32>
    %52 = arith.mulf %50, %51 : vector<8x8xf32>
    %53 = arith.truncf %52 : vector<8x8xf32> to vector<8x8xbf16>
    %54 = vector.extract_strided_slice %7 {offsets = [0, 48], sizes = [8, 8], strides = [1, 1]} : vector<8x96xf32> to vector<8x8xf32>
    %55 = arith.truncf %54 : vector<8x8xf32> to vector<8x8xbf16>
    %56 = vector.extract_strided_slice %7 {offsets = [0, 80], sizes = [8, 8], strides = [1, 1]} : vector<8x96xf32> to vector<8x8xf32>
    %57 = arith.truncf %56 : vector<8x8xf32> to vector<8x8xbf16>
    %cst_20 = arith.constant dense<0.000000e+00> : vector<8x8xf32>
    %58 = tpu.matmul %53, %55, %cst_20 {dimension_numbers = #tpu.dot_dimension_numbers<[1], [1], [0], [0], [0, 0, 1, 0], [], []>} : vector<8x8xbf16>, vector<8x8xbf16>, vector<8x8xf32> -> vector<8x8xf32>
    %cst_21 = arith.constant dense<0xFF800000> : vector<8xf32>
    %59 = vector.multi_reduction <maximumf>, %58, %cst_21 [1] : vector<8x8xf32> to vector<8xf32>
    %60 = vector.shape_cast %59 : vector<8xf32> to vector<8x1xf32>
    %61 = vector.broadcast %60 : vector<8x1xf32> to vector<8x8xf32>
    %62 = arith.subf %58, %61 : vector<8x8xf32>
    %63 = math.exp %62 : vector<8x8xf32>
    %cst_22 = arith.constant dense<0.000000e+00> : vector<8xf32>
    %64 = vector.multi_reduction <add>, %63, %cst_22 [1] : vector<8x8xf32> to vector<8xf32>
    %65 = vector.shape_cast %64 : vector<8xf32> to vector<8x1xf32>
    %66 = arith.truncf %63 : vector<8x8xf32> to vector<8x8xbf16>
    %cst_23 = arith.constant dense<0.000000e+00> : vector<8x8xf32>
    %67 = tpu.matmul %66, %57, %cst_23 {dimension_numbers = #tpu.dot_dimension_numbers<[1], [0], [0], [1], [0, 0, 1, 1], [], []>} : vector<8x8xbf16>, vector<8x8xbf16>, vector<8x8xf32> -> vector<8x8xf32>
    %68 = vector.broadcast %65 : vector<8x1xf32> to vector<8x8xf32>
    %69 = arith.divf %67, %68 : vector<8x8xf32>
    %c0_24 = arith.constant 0 : index
    %c16 = arith.constant 16 : index
    %70 = vector.load %arg9[%c0_24, %c16] : memref<8x32xf32, #tpu.memory_space<vmem>>, vector<8x8xf32>
    tpu.vector_store %arg9[%c0_24, %c16], %69 {strides = array<i32>} : memref<8x32xf32, #tpu.memory_space<vmem>>, vector<8x8xf32>,
    %71 = vector.extract_strided_slice %7 {offsets = [0, 24], sizes = [8, 8], strides = [1, 1]} : vector<8x96xf32> to vector<8x8xf32>
    %cst_25 = arith.constant 0.353553385 : f32
    %72 = vector.broadcast %cst_25 : f32 to vector<8x8xf32>
    %73 = arith.mulf %71, %72 : vector<8x8xf32>
    %74 = arith.truncf %73 : vector<8x8xf32> to vector<8x8xbf16>
    %75 = vector.extract_strided_slice %7 {offsets = [0, 56], sizes = [8, 8], strides = [1, 1]} : vector<8x96xf32> to vector<8x8xf32>
    %76 = arith.truncf %75 : vector<8x8xf32> to vector<8x8xbf16>
    %77 = vector.extract_strided_slice %7 {offsets = [0, 88], sizes = [8, 8], strides = [1, 1]} : vector<8x96xf32> to vector<8x8xf32>
    %78 = arith.truncf %77 : vector<8x8xf32> to vector<8x8xbf16>
    %cst_26 = arith.constant dense<0.000000e+00> : vector<8x8xf32>
    %79 = tpu.matmul %74, %76, %cst_26 {dimension_numbers = #tpu.dot_dimension_numbers<[1], [1], [0], [0], [0, 0, 1, 0], [], []>} : vector<8x8xbf16>, vector<8x8xbf16>, vector<8x8xf32> -> vector<8x8xf32>
    %cst_27 = arith.constant dense<0xFF800000> : vector<8xf32>
    %80 = vector.multi_reduction <maximumf>, %79, %cst_27 [1] : vector<8x8xf32> to vector<8xf32>
    %81 = vector.shape_cast %80 : vector<8xf32> to vector<8x1xf32>
    %82 = vector.broadcast %81 : vector<8x1xf32> to vector<8x8xf32>
    %83 = arith.subf %79, %82 : vector<8x8xf32>
    %84 = math.exp %83 : vector<8x8xf32>
    %cst_28 = arith.constant dense<0.000000e+00> : vector<8xf32>
    %85 = vector.multi_reduction <add>, %84, %cst_28 [1] : vector<8x8xf32> to vector<8xf32>
    %86 = vector.shape_cast %85 : vector<8xf32> to vector<8x1xf32>
    %87 = arith.truncf %84 : vector<8x8xf32> to vector<8x8xbf16>
    %cst_29 = arith.constant dense<0.000000e+00> : vector<8x8xf32>
    %88 = tpu.matmul %87, %78, %cst_29 {dimension_numbers = #tpu.dot_dimension_numbers<[1], [0], [0], [1], [0, 0, 1, 1], [], []>} : vector<8x8xbf16>, vector<8x8xbf16>, vector<8x8xf32> -> vector<8x8xf32>
    %89 = vector.broadcast %86 : vector<8x1xf32> to vector<8x8xf32>
    %90 = arith.divf %88, %89 : vector<8x8xf32>
    %c0_30 = arith.constant 0 : index
    %c24 = arith.constant 24 : index
    %91 = vector.load %arg9[%c0_30, %c24] : memref<8x32xf32, #tpu.memory_space<vmem>>, vector<8x8xf32>
    tpu.vector_store %arg9[%c0_30, %c24], %90 {strides = array<i32>} : memref<8x32xf32, #tpu.memory_space<vmem>>, vector<8x8xf32>,
    %c0_31 = arith.constant 0 : index
    %c0_32 = arith.constant 0 : index
    %92 = vector.load %arg9[%c0_31, %c0_32] : memref<8x32xf32, #tpu.memory_space<vmem>>, vector<8x32xf32>
    %93 = arith.truncf %92 : vector<8x32xf32> to vector<8x32xbf16>
    %c0_33 = arith.constant 0 : index
    %c0_34 = arith.constant 0 : index
    %94 = vector.load %arg4[%c0_33, %c0_34] : memref<32x32xbf16, #tpu.memory_space<vmem>>, vector<32x32xbf16>
    %cst_35 = arith.constant dense<0.000000e+00> : vector<8x32xf32>
    %95 = tpu.matmul %93, %94, %cst_35 {dimension_numbers = #tpu.dot_dimension_numbers<[1], [0], [0], [1], [0, 0, 1, 1], [], []>} : vector<8x32xbf16>, vector<32x32xbf16>, vector<8x32xf32> -> vector<8x32xf32>
    %c0_36 = arith.constant 0 : index
    %c0_37 = arith.constant 0 : index
    %96 = vector.load %arg5[%c0_36, %c0_37] : memref<1x32xf32, #tpu.memory_space<vmem>>, vector<1x32xf32>
    %97 = vector.broadcast %96 : vector<1x32xf32> to vector<8x32xf32>
    %98 = arith.addf %95, %97 : vector<8x32xf32>
    %99 = arith.addf %1, %98 : vector<8x32xf32>
    %cst_38 = arith.constant dense<0.000000e+00> : vector<8xf32>
    %100 = vector.multi_reduction <add>, %99, %cst_38 [1] : vector<8x32xf32> to vector<8xf32>
    %101 = vector.shape_cast %100 : vector<8xf32> to vector<8x1xf32>
    %cst_39 = arith.constant 3.200000e+01 : f32
    %102 = vector.broadcast %cst_39 : f32 to vector<8x1xf32>
    %103 = arith.divf %101, %102 : vector<8x1xf32>
    %104 = vector.broadcast %103 : vector<8x1xf32> to vector<8x32xf32>
    %105 = arith.subf %99, %104 : vector<8x32xf32>
    %106 = arith.mulf %105, %105 : vector<8x32xf32>
    %cst_40 = arith.constant dense<0.000000e+00> : vector<8xf32>
    %107 = vector.multi_reduction <add>, %106, %cst_40 [1] : vector<8x32xf32> to vector<8xf32>
    %108 = vector.shape_cast %107 : vector<8xf32> to vector<8x1xf32>
    %cst_41 = arith.constant 3.200000e+01 : f32
    %109 = vector.broadcast %cst_41 : f32 to vector<8x1xf32>
    %110 = arith.divf %108, %109 : vector<8x1xf32>
    %cst_42 = arith.constant 9.99999974E-6 : f32
    %111 = vector.broadcast %cst_42 : f32 to vector<8x1xf32>
    %112 = arith.addf %110, %111 : vector<8x1xf32>
    %113 = math.rsqrt %112 : vector<8x1xf32>
    %114 = vector.broadcast %113 : vector<8x1xf32> to vector<8x32xf32>
    %115 = arith.mulf %105, %114 : vector<8x32xf32>
    %c0_43 = arith.constant 0 : index
    %c0_44 = arith.constant 0 : index
    %116 = vector.load %arg6[%c0_43, %c0_44] : memref<1x32xf32, #tpu.memory_space<vmem>>, vector<1x32xf32>
    %117 = vector.broadcast %116 : vector<1x32xf32> to vector<8x32xf32>
    %118 = arith.mulf %115, %117 : vector<8x32xf32>
    %c0_45 = arith.constant 0 : index
    %c0_46 = arith.constant 0 : index
    %119 = vector.load %arg7[%c0_45, %c0_46] : memref<1x32xf32, #tpu.memory_space<vmem>>, vector<1x32xf32>
    %120 = vector.broadcast %119 : vector<1x32xf32> to vector<8x32xf32>
    %121 = arith.addf %118, %120 : vector<8x32xf32>
    %122 = arith.truncf %121 : vector<8x32xf32> to vector<8x32xbf16>
    %c0_47 = arith.constant 0 : index
    %c0_48 = arith.constant 0 : index
    %c0_49 = arith.constant 0 : index
    %123 = vector.load %arg8[%c0_47, %c0_48, %c0_49] : memref<1x8x32xbf16, #tpu.memory_space<vmem>>, vector<1x8x32xbf16>
    %124 = vector.shape_cast %123 : vector<1x8x32xbf16> to vector<8x32xbf16>
    %125 = vector.shape_cast %122 : vector<8x32xbf16> to vector<1x8x32xbf16>
    tpu.vector_store %arg8[%c0_47, %c0_48, %c0_49], %125 {strides = array<i32>} : memref<1x8x32xbf16, #tpu.memory_space<vmem>>, vector<1x8x32xbf16>,
    return
  }
  func.func @transform_0(%arg0: i32) -> (i32, i32, i32) {
    %c0_i32 = arith.constant 0 : i32
    %c0_i32_0 = arith.constant 0 : i32
    %c0_i32_1 = arith.constant 0 : i32
    return %arg0, %c0_i32, %c0_i32_0 : i32, i32, i32
  }
  func.func @transform_1(%arg0: i32) -> (i32, i32) {
    %c0_i32 = arith.constant 0 : i32
    %c0_i32_0 = arith.constant 0 : i32
    %c0_i32_1 = arith.constant 0 : i32
    return %c0_i32, %c0_i32_0 : i32, i32
  }
  func.func @transform_2(%arg0: i32) -> (i32, i32) {
    %c0_i32 = arith.constant 0 : i32
    %c0_i32_0 = arith.constant 0 : i32
    %c0_i32_1 = arith.constant 0 : i32
    return %c0_i32, %c0_i32_0 : i32, i32
  }
  func.func @transform_3(%arg0: i32) -> (i32, i32) {
    %c0_i32 = arith.constant 0 : i32
    %c0_i32_0 = arith.constant 0 : i32
    %c0_i32_1 = arith.constant 0 : i32
    return %c0_i32, %c0_i32_0 : i32, i32
  }
  func.func @transform_4(%arg0: i32) -> (i32, i32) {
    %c0_i32 = arith.constant 0 : i32
    %c0_i32_0 = arith.constant 0 : i32
    %c0_i32_1 = arith.constant 0 : i32
    return %c0_i32, %c0_i32_0 : i32, i32
  }
  func.func @transform_5(%arg0: i32) -> (i32, i32) {
    %c0_i32 = arith.constant 0 : i32
    %c0_i32_0 = arith.constant 0 : i32
    %c0_i32_1 = arith.constant 0 : i32
    return %c0_i32, %c0_i32_0 : i32, i32
  }
  func.func @transform_6(%arg0: i32) -> (i32, i32) {
    %c0_i32 = arith.constant 0 : i32
    %c0_i32_0 = arith.constant 0 : i32
    %c0_i32_1 = arith.constant 0 : i32
    return %c0_i32, %c0_i32_0 : i32, i32
  }
  func.func @transform_7(%arg0: i32) -> (i32, i32, i32) {
    %c0_i32 = arith.constant 0 : i32
    %c0_i32_0 = arith.constant 0 : i32
    %c0_i32_1 = arith.constant 0 : i32
    return %arg0, %c0_i32, %c0_i32_0 : i32, i32, i32
  }
}

module attributes {stable_mosaic.version = 11 : i64} {
  func.func @_ffn_block_kernel(%arg0: i32, %arg1: memref<16x32xbf16, #tpu.memory_space<vmem>>, %arg2: memref<32x64xbf16, #tpu.memory_space<vmem>>, %arg3: memref<1x64xf32, #tpu.memory_space<vmem>>, %arg4: memref<64x32xbf16, #tpu.memory_space<vmem>>, %arg5: memref<1x32xf32, #tpu.memory_space<vmem>>, %arg6: memref<1x32xf32, #tpu.memory_space<vmem>>, %arg7: memref<1x32xf32, #tpu.memory_space<vmem>>, %arg8: memref<16x32xf32, #tpu.memory_space<vmem>>) attributes {dimension_semantics = [#tpu.dimension_semantics<parallel>], iteration_bounds = array<i64: 1>, scalar_prefetch = 0 : i64, scratch_operands = 0 : i64, tpu.core_type = #tpu.core_type<tc>, window_params = [{transform_indices = @transform_0, window_bounds = array<i64: 16, 32>}, {pipeline_mode = #tpu.pipeline_mode<synchronous>, transform_indices = @transform_1, window_bounds = array<i64: 32, 64>}, {pipeline_mode = #tpu.pipeline_mode<synchronous>, transform_indices = @transform_2, window_bounds = array<i64: 1, 64>}, {pipeline_mode = #tpu.pipeline_mode<synchronous>, transform_indices = @transform_3, window_bounds = array<i64: 64, 32>}, {pipeline_mode = #tpu.pipeline_mode<synchronous>, transform_indices = @transform_4, window_bounds = array<i64: 1, 32>}, {pipeline_mode = #tpu.pipeline_mode<synchronous>, transform_indices = @transform_5, window_bounds = array<i64: 1, 32>}, {pipeline_mode = #tpu.pipeline_mode<synchronous>, transform_indices = @transform_6, window_bounds = array<i64: 1, 32>}, {transform_indices = @transform_7, window_bounds = array<i64: 16, 32>}]} {
    %c0 = arith.constant 0 : index
    %c0_0 = arith.constant 0 : index
    %0 = vector.load %arg1[%c0, %c0_0] : memref<16x32xbf16, #tpu.memory_space<vmem>>, vector<16x32xbf16>
    %c0_1 = arith.constant 0 : index
    %c0_2 = arith.constant 0 : index
    %1 = vector.load %arg2[%c0_1, %c0_2] : memref<32x64xbf16, #tpu.memory_space<vmem>>, vector<32x64xbf16>
    %cst = arith.constant dense<0.000000e+00> : vector<16x64xf32>
    %2 = tpu.matmul %0, %1, %cst {dimension_numbers = #tpu.dot_dimension_numbers<[1], [0], [0], [1], [0, 0, 1, 1], [], []>} : vector<16x32xbf16>, vector<32x64xbf16>, vector<16x64xf32> -> vector<16x64xf32>
    %c0_3 = arith.constant 0 : index
    %c0_4 = arith.constant 0 : index
    %3 = vector.load %arg3[%c0_3, %c0_4] : memref<1x64xf32, #tpu.memory_space<vmem>>, vector<1x64xf32>
    %4 = vector.broadcast %3 : vector<1x64xf32> to vector<16x64xf32>
    %5 = arith.addf %2, %4 : vector<16x64xf32>
    %cst_5 = arith.constant 0.000000e+00 : f32
    %6 = vector.broadcast %cst_5 : f32 to vector<16x64xf32>
    %7 = arith.maximumf %5, %6 : vector<16x64xf32>
    %8 = arith.truncf %7 : vector<16x64xf32> to vector<16x64xbf16>
    %c0_6 = arith.constant 0 : index
    %c0_7 = arith.constant 0 : index
    %9 = vector.load %arg4[%c0_6, %c0_7] : memref<64x32xbf16, #tpu.memory_space<vmem>>, vector<64x32xbf16>
    %cst_8 = arith.constant dense<0.000000e+00> : vector<16x32xf32>
    %10 = tpu.matmul %8, %9, %cst_8 {dimension_numbers = #tpu.dot_dimension_numbers<[1], [0], [0], [1], [0, 0, 1, 1], [], []>} : vector<16x64xbf16>, vector<64x32xbf16>, vector<16x32xf32> -> vector<16x32xf32>
    %c0_9 = arith.constant 0 : index
    %c0_10 = arith.constant 0 : index
    %11 = vector.load %arg5[%c0_9, %c0_10] : memref<1x32xf32, #tpu.memory_space<vmem>>, vector<1x32xf32>
    %12 = vector.broadcast %11 : vector<1x32xf32> to vector<16x32xf32>
    %13 = arith.addf %10, %12 : vector<16x32xf32>
    %14 = arith.extf %0 : vector<16x32xbf16> to vector<16x32xf32>
    %15 = arith.addf %14, %13 : vector<16x32xf32>
    %cst_11 = arith.constant dense<0.000000e+00> : vector<16xf32>
    %16 = vector.multi_reduction <add>, %15, %cst_11 [1] : vector<16x32xf32> to vector<16xf32>
    %17 = vector.shape_cast %16 : vector<16xf32> to vector<16x1xf32>
    %cst_12 = arith.constant 3.200000e+01 : f32
    %18 = vector.broadcast %cst_12 : f32 to vector<16x1xf32>
    %19 = arith.divf %17, %18 : vector<16x1xf32>
    %20 = vector.broadcast %19 : vector<16x1xf32> to vector<16x32xf32>
    %21 = arith.subf %15, %20 : vector<16x32xf32>
    %22 = arith.mulf %21, %21 : vector<16x32xf32>
    %cst_13 = arith.constant dense<0.000000e+00> : vector<16xf32>
    %23 = vector.multi_reduction <add>, %22, %cst_13 [1] : vector<16x32xf32> to vector<16xf32>
    %24 = vector.shape_cast %23 : vector<16xf32> to vector<16x1xf32>
    %cst_14 = arith.constant 3.200000e+01 : f32
    %25 = vector.broadcast %cst_14 : f32 to vector<16x1xf32>
    %26 = arith.divf %24, %25 : vector<16x1xf32>
    %cst_15 = arith.constant 9.99999974E-6 : f32
    %27 = vector.broadcast %cst_15 : f32 to vector<16x1xf32>
    %28 = arith.addf %26, %27 : vector<16x1xf32>
    %29 = math.rsqrt %28 : vector<16x1xf32>
    %30 = vector.broadcast %29 : vector<16x1xf32> to vector<16x32xf32>
    %31 = arith.mulf %21, %30 : vector<16x32xf32>
    %c0_16 = arith.constant 0 : index
    %c0_17 = arith.constant 0 : index
    %32 = vector.load %arg6[%c0_16, %c0_17] : memref<1x32xf32, #tpu.memory_space<vmem>>, vector<1x32xf32>
    %33 = vector.broadcast %32 : vector<1x32xf32> to vector<16x32xf32>
    %34 = arith.mulf %31, %33 : vector<16x32xf32>
    %c0_18 = arith.constant 0 : index
    %c0_19 = arith.constant 0 : index
    %35 = vector.load %arg7[%c0_18, %c0_19] : memref<1x32xf32, #tpu.memory_space<vmem>>, vector<1x32xf32>
    %36 = vector.broadcast %35 : vector<1x32xf32> to vector<16x32xf32>
    %37 = arith.addf %34, %36 : vector<16x32xf32>
    %c0_20 = arith.constant 0 : index
    %c0_21 = arith.constant 0 : index
    %38 = vector.load %arg8[%c0_20, %c0_21] : memref<16x32xf32, #tpu.memory_space<vmem>>, vector<16x32xf32>
    tpu.vector_store %arg8[%c0_20, %c0_21], %37 {strides = array<i32>} : memref<16x32xf32, #tpu.memory_space<vmem>>, vector<16x32xf32>,
    return
  }
  func.func @transform_0(%arg0: i32) -> (i32, i32) {
    %c0_i32 = arith.constant 0 : i32
    %c0_i32_0 = arith.constant 0 : i32
    return %arg0, %c0_i32 : i32, i32
  }
  func.func @transform_1(%arg0: i32) -> (i32, i32) {
    %c0_i32 = arith.constant 0 : i32
    %c0_i32_0 = arith.constant 0 : i32
    %c0_i32_1 = arith.constant 0 : i32
    return %c0_i32, %c0_i32_0 : i32, i32
  }
  func.func @transform_2(%arg0: i32) -> (i32, i32) {
    %c0_i32 = arith.constant 0 : i32
    %c0_i32_0 = arith.constant 0 : i32
    %c0_i32_1 = arith.constant 0 : i32
    return %c0_i32, %c0_i32_0 : i32, i32
  }
  func.func @transform_3(%arg0: i32) -> (i32, i32) {
    %c0_i32 = arith.constant 0 : i32
    %c0_i32_0 = arith.constant 0 : i32
    %c0_i32_1 = arith.constant 0 : i32
    return %c0_i32, %c0_i32_0 : i32, i32
  }
  func.func @transform_4(%arg0: i32) -> (i32, i32) {
    %c0_i32 = arith.constant 0 : i32
    %c0_i32_0 = arith.constant 0 : i32
    %c0_i32_1 = arith.constant 0 : i32
    return %c0_i32, %c0_i32_0 : i32, i32
  }
  func.func @transform_5(%arg0: i32) -> (i32, i32) {
    %c0_i32 = arith.constant 0 : i32
    %c0_i32_0 = arith.constant 0 : i32
    %c0_i32_1 = arith.constant 0 : i32
    return %c0_i32, %c0_i32_0 : i32, i32
  }
  func.func @transform_6(%arg0: i32) -> (i32, i32) {
    %c0_i32 = arith.constant 0 : i32
    %c0_i32_0 = arith.constant 0 : i32
    %c0_i32_1 = arith.constant 0 : i32
    return %c0_i32, %c0_i32_0 : i32, i32
  }
  func.func @transform_7(%arg0: i32) -> (i32, i32) {
    %c0_i32 = arith.constant 0 : i32
    %c0_i32_0 = arith.constant 0 : i32
    return %arg0, %c0_i32 : i32, i32
  }
}

</mosaic_0001>

<llo_original>
// kernel: encoder_layer_fwd.3
$region0: #{encoder_layer_fwd.3}
  #allocation0 [shape = 'u32[]', space=smem, size = 0x4, offset = 0x4, fixed_abs, tag = 'smem constant byte address 0x4 - core index']
  #allocation1 [shape = 'u32[144,128]{1,0:T(1,128)}', space=vmem, size = 0x12000, scoped, tag = 'internal scratch']
  %s0 = inlined_call_operand.vmem [shape: bf16[16,32], index: 0, kind: input, shape index: {}]
  %s1 = inlined_call_operand.vmem [shape: bf16[32,64], index: 1, kind: input, shape index: {}]
  %s2 = inlined_call_operand.vmem [shape: f32[1,64], index: 2, kind: input, shape index: {}]
  %s3 = inlined_call_operand.vmem [shape: bf16[64,32], index: 3, kind: input, shape index: {}]
  %s4 = inlined_call_operand.vmem [shape: f32[1,32], index: 4, kind: input, shape index: {}]
  %s5 = inlined_call_operand.vmem [shape: f32[1,32], index: 5, kind: input, shape index: {}]
  %s6 = inlined_call_operand.vmem [shape: f32[1,32], index: 6, kind: input, shape index: {}]
  %s7 = inlined_call_operand.hbm [shape: f32[16,32], index: 7, kind: output, shape index: {}]
  %s8 = sld [smem:[#allocation0]]
  $region38: #{encoder_layer_fwd.3} parent=0
    _
  %s10 = ssub.s32 1, %s8
  %s11 = scalar_select 0, %s10, %s8
  $region1: #{encoder_layer_fwd.3} parent=0
    #allocation2 [shape = 'u8[8192]{0}', space=vmem, size = 0x2000, scoped, tag = 'output window, operand 0, single buffered']
    #allocation3 [shape = 's32[1]{0}', space=sflag, size = 0x4, scoped, tag = 'scoped memory for encoder_layer_fwd.3']
    %12 = vsyncpa [#allocation3], 0
    // Predicated region
    $region2: #{encoder_layer_fwd.3} parent=1 // pred_check
      _
    $region3: #{encoder_layer_fwd.3} parent=1 // pred_check_branch
      %14 = sbr.rel (0) target = $region5
    $region4: #{encoder_layer_fwd.3} parent=1 // pred_region
      _
    $region5: #{encoder_layer_fwd.3} parent=1 // pred_fallthru
      _
    // Predicated region
    $region6: #{encoder_layer_fwd.3} parent=1 // pred_check
      _
    $region7: #{encoder_layer_fwd.3} parent=1 // pred_check_branch
      %16 = sbr.rel (0) target = $region9
    $region8: #{encoder_layer_fwd.3} parent=1 // pred_region
      _
    $region9: #{encoder_layer_fwd.3} parent=1 // pred_fallthru
      _
    // Predicated region
    $region10: #{encoder_layer_fwd.3} parent=1 // pred_check
      _
    $region11: #{encoder_layer_fwd.3} parent=1 // pred_check_branch
      %18 = sbr.rel (0) target = $region13
    $region12: #{encoder_layer_fwd.3} parent=1 // pred_region
      _
    $region13: #{encoder_layer_fwd.3} parent=1 // pred_fallthru
      _
    // Predicated region
    $region14: #{encoder_layer_fwd.3} parent=1 // pred_check
      _
    $region15: #{encoder_layer_fwd.3} parent=1 // pred_check_branch
      %20 = sbr.rel (0) target = $region17
    $region16: #{encoder_layer_fwd.3} parent=1 // pred_region
      _
    $region17: #{encoder_layer_fwd.3} parent=1 // pred_fallthru
      _
    // Predicated region
    $region18: #{encoder_layer_fwd.3} parent=1 // pred_check
      _
    $region19: #{encoder_layer_fwd.3} parent=1 // pred_check_branch
      %22 = sbr.rel (0) target = $region21
    $region20: #{encoder_layer_fwd.3} parent=1 // pred_region
      _
    $region21: #{encoder_layer_fwd.3} parent=1 // pred_fallthru
      _
    // Predicated region
    $region22: #{encoder_layer_fwd.3} parent=1 // pred_check
      _
    $region23: #{encoder_layer_fwd.3} parent=1 // pred_check_branch
      %24 = sbr.rel (0) target = $region25
    $region24: #{encoder_layer_fwd.3} parent=1 // pred_region
      _
    $region25: #{encoder_layer_fwd.3} parent=1 // pred_fallthru
      _
    // Predicated region
    $region26: #{encoder_layer_fwd.3} parent=1 // pred_check
      _
    $region27: #{encoder_layer_fwd.3} parent=1 // pred_check_branch
      %26 = sbr.rel (0) target = $region29
    $region28: #{encoder_layer_fwd.3} parent=1 // pred_region
      _
    $region29: #{encoder_layer_fwd.3} parent=1 // pred_fallthru
      _
    %v28 = vld [vmem:[%s0] sm:$0xf]
    %v29 = vld [vmem:[%s0 + $0x4] sm:$0xf]
    %v30 = vld [vmem:[%s1] sm:$0xf]
    %v31 = vld [vmem:[%s1 + $0x4] sm:$0xf]
    %v32 = vld [vmem:[%s1 + $0x8] sm:$0xf]
    %v33 = vld [vmem:[%s1 + $0xc] sm:$0xf]
    %v34 = vld [vmem:[%s2] sm:$0x1]
    %v36 = vlaneseq
    %v37 = vshrl.u32 %v36, 7
    %v38 = vsub.s32 0, %v37
    %v39 = vrot.slane %v34, %v38
    %v43 = vunpack.c.l.b16 %v28
    %v44 = vunpack.c.l.b16 %v29
    %v45 = vpack.c.b16 %v44, %v43
    %v50 = vunpack.c.l.b16 %v30
    %v51 = vunpack.c.l.b16 %v31
    %v52 = vunpack.c.l.b16 %v32
    %v53 = vunpack.c.l.b16 %v33
    %v54 = vpack.c.b16 %v51, %v50
    %v55 = vpack.c.b16 %v53, %v52
    %vm58 = vcmask 261120
    %v60 = vsel %vm58, %v45, 0
    %62 = vmatprep.subr.bf16.mxu0 0
    %63 = vmatpush1.bf16.msra.mxu0 %v54
    %64 = vmatprep.subr.bf16.mxu0 0
    %65 = vmatpush1.bf16.msra.mxu0 %v55
    %66 = vmatprep.subr.bf16.mxu0 0
    %67 = vmatpush1.bf16.msra.mxu0 0
    %68 = vmatprep.subr.bf16.mxu0 0
    %69 = vmatpush1.bf16.msra.mxu0 0
    %70 = vmatprep.subr.bf16.mxu0 0
    %71 = vmatpush1.bf16.msra.mxu0 0
    %72 = vmatprep.subr.bf16.mxu0 0
    %73 = vmatpush1.bf16.msra.mxu0 0
    %74 = vmatprep.subr.bf16.mxu0 0
    %75 = vmatpush1.bf16.msra.mxu0 0
    %76 = vmatprep.subr.bf16.mxu0 0
    %77 = vmatpush1.bf16.msra.mxu0 0
    %78 = vmatprep.subr.bf16.mxu0 0
    %79 = vmatpush1.bf16.msra.mxu0 0
    %80 = vmatprep.subr.bf16.mxu0 0
    %81 = vmatpush1.bf16.msra.mxu0 0
    %82 = vmatprep.subr.bf16.mxu0 0
    %83 = vmatpush1.bf16.msra.mxu0 0
    %84 = vmatprep.subr.bf16.mxu0 0
    %85 = vmatpush1.bf16.msra.mxu0 0
    %86 = vmatprep.subr.bf16.mxu0 0
    %87 = vmatpush1.bf16.msra.mxu0 0
    %88 = vmatprep.subr.bf16.mxu0 0
    %89 = vmatpush1.bf16.msra.mxu0 0
    %90 = vmatprep.subr.bf16.mxu0 0
    %91 = vmatpush1.bf16.msra.mxu0 0
    %92 = vmatprep.subr.bf16.mxu0 0
    %93 = vmatpush1.bf16.msra.mxu0 0
    %94 = vmatprep.mubr.bf16.mxu0 0
    %95 = vmatmul.mubr.bf16.gmra.mrb[0].mxu0 %v60
    %v96 = vpop.f32.mrb[0].mxu0
    %v97 = vadd.f32 %v39, %v96
    %v98 = vpop.f32.mrb[0].mxu0
    %v99 = vpop.f32.mrb[0].mxu0
    %v100 = vadd.f32 %v39, %v99
    %v101 = vpop.f32.mrb[0].mxu0
    %102 = vdwg.mxu0
    %v103 = vmax.f32 %v97, 0.0
    %v104 = vmax.f32 %v100, 0.0
    %v105 = vpack.c.bf16 %v104, %v103
    %v106 = vld [vmem:[%s3] sm:$0xf]
    %v107 = vld [vmem:[%s3 + $0x4] sm:$0xf]
    %v108 = vld [vmem:[%s3 + $0x8] sm:$0xf]
    %v109 = vld [vmem:[%s3 + $0xc] sm:$0xf]
    %v110 = vld [vmem:[%s3 + $0x10] sm:$0xf]
    %v111 = vld [vmem:[%s3 + $0x14] sm:$0xf]
    %v112 = vld [vmem:[%s3 + $0x18] sm:$0xf]
    %v113 = vld [vmem:[%s3 + $0x1c] sm:$0xf]
    %v114 = vld [vmem:[%s4] sm:$0x1]
    %v116 = vlaneseq
    %v117 = vshrl.u32 %v116, 7
    %v118 = vsub.s32 0, %v117
    %v119 = vrot.slane %v114, %v118
    %v129 = vunpack.c.l.b16 %v106
    %v130 = vunpack.c.l.b16 %v107
    %v131 = vunpack.c.l.b16 %v108
    %v132 = vunpack.c.l.b16 %v109
    %v133 = vunpack.c.l.b16 %v110
    %v134 = vunpack.c.l.b16 %v111
    %v135 = vunpack.c.l.b16 %v112
    %v136 = vunpack.c.l.b16 %v113
    %v137 = vpack.c.b16 %v130, %v129
    %v138 = vpack.c.b16 %v132, %v131
    %v139 = vpack.c.b16 %v134, %v133
    %v140 = vpack.c.b16 %v136, %v135
    %vm145 = vcmask 523264
    %v147 = vsel %vm145, %v105, 0
    %149 = vmatprep.subr.bf16.mxu0 0
    %150 = vmatpush1.bf16.msra.mxu0 %v137
    %151 = vmatprep.subr.bf16.mxu0 0
    %152 = vmatpush1.bf16.msra.mxu0 %v138
    %153 = vmatprep.subr.bf16.mxu0 0
    %154 = vmatpush1.bf16.msra.mxu0 %v139
    %155 = vmatprep.subr.bf16.mxu0 0
    %156 = vmatpush1.bf16.msra.mxu0 %v140
    %157 = vmatprep.subr.bf16.mxu0 0
    %158 = vmatpush1.bf16.msra.mxu0 0
    %159 = vmatprep.subr.bf16.mxu0 0
    %160 = vmatpush1.bf16.msra.mxu0 0
    %161 = vmatprep.subr.bf16.mxu0 0
    %162 = vmatpush1.bf16.msra.mxu0 0
    %163 = vmatprep.subr.bf16.mxu0 0
    %164 = vmatpush1.bf16.msra.mxu0 0
    %165 = vmatprep.subr.bf16.mxu0 0
    %166 = vmatpush1.bf16.msra.mxu0 0
    %167 = vmatprep.subr.bf16.mxu0 0
    %168 = vmatpush1.bf16.msra.mxu0 0
    %169 = vmatprep.subr.bf16.mxu0 0
    %170 = vmatpush1.bf16.msra.mxu0 0
    %171 = vmatprep.subr.bf16.mxu0 0
    %172 = vmatpush1.bf16.msra.mxu0 0
    %173 = vmatprep.subr.bf16.mxu0 0
    %174 = vmatpush1.bf16.msra.mxu0 0
    %175 = vmatprep.subr.bf16.mxu0 0
    %176 = vmatpush1.bf16.msra.mxu0 0
    %177 = vmatprep.subr.bf16.mxu0 0
    %178 = vmatpush1.bf16.msra.mxu0 0
    %179 = vmatprep.subr.bf16.mxu0 0
    %180 = vmatpush1.bf16.msra.mxu0 0
    %181 = vmatprep.mubr.bf16.mxu0 0
    %182 = vmatmul.mubr.bf16.gmra.mrb[0].mxu0 %v147
    %v183 = vpop.f32.mrb[0].mxu0
    %v184 = vadd.f32 %v119, %v183
    %v185 = vpop.f32.mrb[0].mxu0
    %v186 = vpop.f32.mrb[0].mxu0
    %v187 = vadd.f32 %v119, %v186
    %v188 = vpop.f32.mrb[0].mxu0
    %189 = vdwg.mxu0
    %v190 = vunpack.c.l.bf16 %v28
    %v191 = vunpack.c.l.bf16 %v29
    %v192 = vadd.f32 %v190, %v184
    %v193 = vadd.f32 %v191, %v187
    %v194 = vsel %vm58, %v192, 0.0
    %195 = vadd.xlane.f32.xlu0 %v194
    %v196 = vpop.xlane.xlu0 %195
    %v197 = vsel %vm58, %v193, 0.0
    %198 = vadd.xlane.f32.xlu0 %v197
    %v199 = vpop.xlane.xlu0 %198
    %v200 = vrcp.pop 32.0
    %v201 = vmul.f32 %v196, %v200
    %v202 = vmul.f32 %v199, %v200
    %v203 = vsub.f32 %v192, %v201
    %v204 = vsub.f32 %v193, %v202
    %v205 = vmul.f32 %v203, %v203
    %v206 = vmul.f32 %v204, %v204
    %v207 = vsel %vm58, %v205, 0.0
    %208 = vadd.xlane.f32.xlu0 %v207
    %v209 = vpop.xlane.xlu0 %208
    %v210 = vsel %vm58, %v206, 0.0
    %211 = vadd.xlane.f32.xlu0 %v210
    %v212 = vpop.xlane.xlu0 %211
    %v213 = vmul.f32 %v209, %v200
    %v214 = vmul.f32 %v212, %v200
    %v215 = vadd.f32 %v213, 1e-05
    %v216 = vadd.f32 %v214, 1e-05
    %v217 = vrsqrt.pop %v215
    %v218 = vrsqrt.pop %v216
    %v219 = vmul.f32 %v203, %v217
    %v220 = vmul.f32 %v204, %v218
    %v221 = vld [vmem:[%s5] sm:$0x1]
    %v223 = vlaneseq
    %v224 = vshrl.u32 %v223, 7
    %v225 = vsub.s32 0, %v224
    %v226 = vrot.slane %v221, %v225
    %v228 = vmul.f32 %v219, %v226
    %v229 = vmul.f32 %v220, %v226
    %v230 = vld [vmem:[%s6] sm:$0x1]
    %v232 = vlaneseq
    %v233 = vshrl.u32 %v232, 7
    %v234 = vsub.s32 0, %v233
    %v235 = vrot.slane %v230, %v234
    %v237 = vadd.f32 %v228, %v235
    %v238 = vadd.f32 %v229, %v235
    %239 = vst.msk [vmem:[#allocation2] sm:$0xff] %vm58, %v237
    %240 = vst.msk [vmem:[#allocation2 + $0x8] sm:$0xff] %vm58, %v238
    // Predicated region
    $region30: #{encoder_layer_fwd.3} parent=1 // pred_check
      _
    $region31: #{encoder_layer_fwd.3} parent=1 // pred_check_branch
      %242 = sbr.rel (0) target = $region33
    $region32: #{encoder_layer_fwd.3} parent=1 // pred_region
      %s244 = ssub.s32 256, 256
      %245 = vsyncadd [#allocation3], %s244
      %s246 = sshll.u32 [#allocation2], 4
      %s247 = int_to_ptr.vmem [resolvable:$true] %s246
      %252 = dma.vmem_to_hbm [thread:$0]  %s247, 256, %s7, [#allocation3], 128, 128, 8
    $region33: #{encoder_layer_fwd.3} parent=1 // pred_fallthru
      _
    // Predicated region
    $region34: #{encoder_layer_fwd.3} parent=1 // pred_check
      _
    $region35: #{encoder_layer_fwd.3} parent=1 // pred_check_branch
      %254 = sbr.rel (0) target = $region37
    $region36: #{encoder_layer_fwd.3} parent=1 // pred_region
      %255 = dma.done [#allocation3], 256
    $region37: #{encoder_layer_fwd.3} parent=1 // pred_fallthru
      _
    %256 = vsyncpa [#allocation3], 1

// kernel: encoder_layer_fwd.2
$region0: #{encoder_layer_fwd.2}
  #allocation0 [shape = 'u32[]', space=smem, size = 0x4, offset = 0x4, fixed_abs, tag = 'smem constant byte address 0x4 - core index']
  #allocation1 [shape = 'u32[144,128]{1,0:T(1,128)}', space=vmem, size = 0x12000, scoped, tag = 'internal scratch']
  #allocation2 [shape = 'f32[8,32]{1,0:T(8,128)}', space=vmem, size = 0x1000, scoped, tag = 'scratch operand']
  %s0 = inlined_call_operand.vmem [shape: f32[2,8,32], index: 0, kind: input, shape index: {}]
  %s1 = inlined_call_operand.vmem [shape: bf16[32,96], index: 1, kind: input, shape index: {}]
  %s2 = inlined_call_operand.vmem [shape: f32[1,96], index: 2, kind: input, shape index: {}]
  %s3 = inlined_call_operand.vmem [shape: bf16[32,32], index: 3, kind: input, shape index: {}]
  %s4 = inlined_call_operand.vmem [shape: f32[1,32], index: 4, kind: input, shape index: {}]
  %s5 = inlined_call_operand.vmem [shape: f32[1,32], index: 5, kind: input, shape index: {}]
  %s6 = inlined_call_operand.vmem [shape: f32[1,32], index: 6, kind: input, shape index: {}]
  %s7 = inlined_call_operand.vmem [shape: bf16[2,8,32], index: 7, kind: output, shape index: {}]
  %s8 = sld [smem:[#allocation0]]
  $region61: #{encoder_layer_fwd.2} parent=0
    _
  %s10 = ssub.s32 1, %s8
  %s11 = scalar_select 0, %s10, %s8
  loop: start=0, step=1, limit=4
  $region2: #{encoder_layer_fwd.2} parent=0 // loop_pre_header
    _
  $region3: #{encoder_layer_fwd.2} parent=0 // loop_header
    %s13 = sphi 0, %s17
    %p14 = scmp.ge.s32.totalorder %s13, 4
    %s23 = sphi 0, %s25
    %s26 = sphi 0, %s23
    %s27 = sphi 0, %s26
    %s43 = sphi 0, %s27
    %s47 = sphi 0, %s47
    %s49 = sphi 0, %s47
    %s50 = sphi 0, %s49
    %s64 = sphi 0, %s50
    %s68 = sphi 0, %s68
    %s70 = sphi 0, %s68
    %s71 = sphi 0, %s70
    %s85 = sphi 0, %s71
    %s89 = sphi 0, %s89
    %s91 = sphi 0, %s89
    %s92 = sphi 0, %s91
    %s106 = sphi 0, %s92
    %s110 = sphi 0, %s110
    %s112 = sphi 0, %s110
    %s113 = sphi 0, %s112
    %s127 = sphi 0, %s113
    %s131 = sphi 0, %s131
    %s133 = sphi 0, %s131
    %s134 = sphi 0, %s133
    %s148 = sphi 0, %s134
    %s152 = sphi 0, %s152
    %s154 = sphi 0, %s152
    %s155 = sphi 0, %s154
    %s169 = sphi 0, %s155
    %s175 = sphi 0, %s177
    %s178 = sphi 0, %s175
    %s179 = sphi 0, %s178
    %s195 = sphi 0, %s179
  $region4: #{encoder_layer_fwd.2} parent=0 // loop_header_branch
    %16 = sbr.rel (%p14) target = $region8
  $region5: #{encoder_layer_fwd.2} parent=0 // loop_body
    %s18 = ssub.s32 %s13, 1
    %s19 = ssub.s32 %s13, 2
    %s20 = sadd.s32 %s13, 1
    %s21 = ssub.s32 %s13, %s20
    %p22 = scmp.eq.s32.totalorder %s21, 0
    %s24 = sadd.s32 %s23, 1
    %s25 = scalar_select %p22, %s23, %s24
    %p28 = pneg %p22
    %p29 = scmp.eq.s32.totalorder %s13, 1
    %p30 = por %p28, %p29
    %p31 = scmp.ne.s32.totalorder %s23, %s26
    %p32 = scmp.eq.s32.totalorder %s13, 0
    %p33 = por %p31, %p32
    %p34 = scmp.ne.s32.totalorder %s23, %s26
    %p35 = scmp.eq.s32.totalorder %s18, 1
    %p36 = por %p34, %p35
    %p37 = scmp.ne.s32.totalorder %s26, %s27
    %p38 = scmp.eq.s32.totalorder %s18, 0
    %p39 = por %p37, %p38
    %p40 = scmp.ne.s32.totalorder %s26, %s27
    %p41 = scmp.eq.s32.totalorder %s19, 1
    %p42 = por %p40, %p41
    %p44 = scmp.ne.s32.totalorder %s27, %s43
    %p45 = scmp.eq.s32.totalorder %s19, 0
    %p46 = por %p44, %p45
    %s48 = sadd.s32 %s47, 1
    %p51 = scmp.eq.s32.totalorder %s13, 1
    %p52 = scmp.ne.s32.totalorder %s47, %s49
    %p53 = scmp.eq.s32.totalorder %s13, 0
    %p54 = por %p52, %p53
    %p55 = scmp.ne.s32.totalorder %s47, %s49
    %p56 = scmp.eq.s32.totalorder %s18, 1
    %p57 = por %p55, %p56
    %p58 = scmp.ne.s32.totalorder %s49, %s50
    %p59 = scmp.eq.s32.totalorder %s18, 0
    %p60 = por %p58, %p59
    %p61 = scmp.ne.s32.totalorder %s49, %s50
    %p62 = scmp.eq.s32.totalorder %s19, 1
    %p63 = por %p61, %p62
    %p65 = scmp.ne.s32.totalorder %s50, %s64
    %p66 = scmp.eq.s32.totalorder %s19, 0
    %p67 = por %p65, %p66
    %s69 = sadd.s32 %s68, 1
    %p72 = scmp.eq.s32.totalorder %s13, 1
    %p73 = scmp.ne.s32.totalorder %s68, %s70
    %p74 = scmp.eq.s32.totalorder %s13, 0
    %p75 = por %p73, %p74
    %p76 = scmp.ne.s32.totalorder %s68, %s70
    %p77 = scmp.eq.s32.totalorder %s18, 1
    %p78 = por %p76, %p77
    %p79 = scmp.ne.s32.totalorder %s70, %s71
    %p80 = scmp.eq.s32.totalorder %s18, 0
    %p81 = por %p79, %p80
    %p82 = scmp.ne.s32.totalorder %s70, %s71
    %p83 = scmp.eq.s32.totalorder %s19, 1
    %p84 = por %p82, %p83
    %p86 = scmp.ne.s32.totalorder %s71, %s85
    %p87 = scmp.eq.s32.totalorder %s19, 0
    %p88 = por %p86, %p87
    %s90 = sadd.s32 %s89, 1
    %p93 = scmp.eq.s32.totalorder %s13, 1
    %p94 = scmp.ne.s32.totalorder %s89, %s91
    %p95 = scmp.eq.s32.totalorder %s13, 0
    %p96 = por %p94, %p95
    %p97 = scmp.ne.s32.totalorder %s89, %s91
    %p98 = scmp.eq.s32.totalorder %s18, 1
    %p99 = por %p97, %p98
    %p100 = scmp.ne.s32.totalorder %s91, %s92
    %p101 = scmp.eq.s32.totalorder %s18, 0
    %p102 = por %p100, %p101
    %p103 = scmp.ne.s32.totalorder %s91, %s92
    %p104 = scmp.eq.s32.totalorder %s19, 1
    %p105 = por %p103, %p104
    %p107 = scmp.ne.s32.totalorder %s92, %s106
    %p108 = scmp.eq.s32.totalorder %s19, 0
    %p109 = por %p107, %p108
    %s111 = sadd.s32 %s110, 1
    %p114 = scmp.eq.s32.totalorder %s13, 1
    %p115 = scmp.ne.s32.totalorder %s110, %s112
    %p116 = scmp.eq.s32.totalorder %s13, 0
    %p117 = por %p115, %p116
    %p118 = scmp.ne.s32.totalorder %s110, %s112
    %p119 = scmp.eq.s32.totalorder %s18, 1
    %p120 = por %p118, %p119
    %p121 = scmp.ne.s32.totalorder %s112, %s113
    %p122 = scmp.eq.s32.totalorder %s18, 0
    %p123 = por %p121, %p122
    %p124 = scmp.ne.s32.totalorder %s112, %s113
    %p125 = scmp.eq.s32.totalorder %s19, 1
    %p126 = por %p124, %p125
    %p128 = scmp.ne.s32.totalorder %s113, %s127
    %p129 = scmp.eq.s32.totalorder %s19, 0
    %p130 = por %p128, %p129
    %s132 = sadd.s32 %s131, 1
    %p135 = scmp.eq.s32.totalorder %s13, 1
    %p136 = scmp.ne.s32.totalorder %s131, %s133
    %p137 = scmp.eq.s32.totalorder %s13, 0
    %p138 = por %p136, %p137
    %p139 = scmp.ne.s32.totalorder %s131, %s133
    %p140 = scmp.eq.s32.totalorder %s18, 1
    %p141 = por %p139, %p140
    %p142 = scmp.ne.s32.totalorder %s133, %s134
    %p143 = scmp.eq.s32.totalorder %s18, 0
    %p144 = por %p142, %p143
    %p145 = scmp.ne.s32.totalorder %s133, %s134
    %p146 = scmp.eq.s32.totalorder %s19, 1
    %p147 = por %p145, %p146
    %p149 = scmp.ne.s32.totalorder %s134, %s148
    %p150 = scmp.eq.s32.totalorder %s19, 0
    %p151 = por %p149, %p150
    %s153 = sadd.s32 %s152, 1
    %p156 = scmp.eq.s32.totalorder %s13, 1
    %p157 = scmp.ne.s32.totalorder %s152, %s154
    %p158 = scmp.eq.s32.totalorder %s13, 0
    %p159 = por %p157, %p158
    %p160 = scmp.ne.s32.totalorder %s152, %s154
    %p161 = scmp.eq.s32.totalorder %s18, 1
    %p162 = por %p160, %p161
    %p163 = scmp.ne.s32.totalorder %s154, %s155
    %p164 = scmp.eq.s32.totalorder %s18, 0
    %p165 = por %p163, %p164
    %p166 = scmp.ne.s32.totalorder %s154, %s155
    %p167 = scmp.eq.s32.totalorder %s19, 1
    %p168 = por %p166, %p167
    %p170 = scmp.ne.s32.totalorder %s155, %s169
    %p171 = scmp.eq.s32.totalorder %s19, 0
    %p172 = por %p170, %p171
    %s173 = ssub.s32 %s13, %s20
    %p174 = scmp.eq.s32.totalorder %s173, 0
    %s176 = sadd.s32 %s175, 1
    %s177 = scalar_select %p174, %s175, %s176
    %p180 = pneg %p174
    %p181 = scmp.eq.s32.totalorder %s13, 1
    %p182 = por %p180, %p181
    %p183 = scmp.ne.s32.totalorder %s175, %s178
    %p184 = scmp.eq.s32.totalorder %s13, 0
    %p185 = por %p183, %p184
    %p186 = scmp.ne.s32.totalorder %s175, %s178
    %p187 = scmp.eq.s32.totalorder %s18, 1
    %p188 = por %p186, %p187
    %p189 = scmp.ne.s32.totalorder %s178, %s179
    %p190 = scmp.eq.s32.totalorder %s18, 0
    %p191 = por %p189, %p190
    %p192 = scmp.ne.s32.totalorder %s178, %s179
    %p193 = scmp.eq.s32.totalorder %s19, 1
    %p194 = por %p192, %p193
    %p196 = scmp.ne.s32.totalorder %s179, %s195
    %p197 = scmp.eq.s32.totalorder %s19, 0
    %p198 = por %p196, %p197
    %p199 = scmp.le.s32.totalorder 1, %s13
    %p200 = scmp.lt.s32.totalorder %s13, 3
    %p201 = pnand %p199, %p200
    %p202 = pneg %p201
    // Predicated region
    $region9: #{encoder_layer_fwd.2} parent=5 // pred_check
      _
    $region10: #{encoder_layer_fwd.2} parent=5 // pred_check_branch
      %204 = sbr.rel (%p201) target = $region12
    $region11: #{encoder_layer_fwd.2} parent=5 // pred_region
      %s205 = ssub.s32 %s13, 1
      // Predicated region
      $region13: #{encoder_layer_fwd.2} parent=11 // pred_check
        %p206 = pneg %p60
      $region14: #{encoder_layer_fwd.2} parent=11 // pred_check_branch
        %208 = sbr.rel (%p206) target = $region16
      $region15: #{encoder_layer_fwd.2} parent=11 // pred_region
        _
      $region16: #{encoder_layer_fwd.2} parent=11 // pred_fallthru
        _
      // Predicated region
      $region17: #{encoder_layer_fwd.2} parent=11 // pred_check
        %p209 = pneg %p81
      $region18: #{encoder_layer_fwd.2} parent=11 // pred_check_branch
        %211 = sbr.rel (%p209) target = $region20
      $region19: #{encoder_layer_fwd.2} parent=11 // pred_region
        _
      $region20: #{encoder_layer_fwd.2} parent=11 // pred_fallthru
        _
      // Predicated region
      $region21: #{encoder_layer_fwd.2} parent=11 // pred_check
        %p212 = pneg %p102
      $region22: #{encoder_layer_fwd.2} parent=11 // pred_check_branch
        %214 = sbr.rel (%p212) target = $region24
      $region23: #{encoder_layer_fwd.2} parent=11 // pred_region
        _
      $region24: #{encoder_layer_fwd.2} parent=11 // pred_fallthru
        _
      // Predicated region
      $region25: #{encoder_layer_fwd.2} parent=11 // pred_check
        %p215 = pneg %p123
      $region26: #{encoder_layer_fwd.2} parent=11 // pred_check_branch
        %217 = sbr.rel (%p215) target = $region28
      $region27: #{encoder_layer_fwd.2} parent=11 // pred_region
        _
      $region28: #{encoder_layer_fwd.2} parent=11 // pred_fallthru
        _
      // Predicated region
      $region29: #{encoder_layer_fwd.2} parent=11 // pred_check
        %p218 = pneg %p144
      $region30: #{encoder_layer_fwd.2} parent=11 // pred_check_branch
        %220 = sbr.rel (%p218) target = $region32
      $region31: #{encoder_layer_fwd.2} parent=11 // pred_region
        _
      $region32: #{encoder_layer_fwd.2} parent=11 // pred_fallthru
        _
      // Predicated region
      $region33: #{encoder_layer_fwd.2} parent=11 // pred_check
        %p221 = pneg %p165
      $region34: #{encoder_layer_fwd.2} parent=11 // pred_check_branch
        %223 = sbr.rel (%p221) target = $region36
      $region35: #{encoder_layer_fwd.2} parent=11 // pred_region
        _
      $region36: #{encoder_layer_fwd.2} parent=11 // pred_fallthru
        _
    $region12: #{encoder_layer_fwd.2} parent=5 // pred_fallthru
      _
    %p224 = scmp.lt.s32.totalorder %s13, 2
    // Predicated region
    $region37: #{encoder_layer_fwd.2} parent=5 // pred_check
      %p225 = pneg %p224
    $region38: #{encoder_layer_fwd.2} parent=5 // pred_check_branch
      %227 = sbr.rel (%p225) target = $region40
    $region39: #{encoder_layer_fwd.2} parent=5 // pred_region
      // Predicated region
      $region41: #{encoder_layer_fwd.2} parent=39 // pred_check
        %p228 = pneg %p33
      $region42: #{encoder_layer_fwd.2} parent=39 // pred_check_branch
        %230 = sbr.rel (%p228) target = $region44
      $region43: #{encoder_layer_fwd.2} parent=39 // pred_region
        %p231 = scmp.lt.s32.totalorder %s13, 1
        %s232 = scalar_select %p231, %s13, 1
        %s233 = smul.addr %s232, 8
        %s234 = scalar_lea.vmem %s0, %s233
      $region44: #{encoder_layer_fwd.2} parent=39 // pred_fallthru
        _
    $region40: #{encoder_layer_fwd.2} parent=5 // pred_fallthru
      _
    %p235 = scmp.le.s32.totalorder 1, %s13
    %p236 = scmp.lt.s32.totalorder %s13, 3
    %p237 = pnand %p235, %p236
    %p238 = pneg %p237
    // Predicated region
    $region45: #{encoder_layer_fwd.2} parent=5 // pred_check
      _
    $region46: #{encoder_layer_fwd.2} parent=5 // pred_check_branch
      %240 = sbr.rel (%p237) target = $region48
    $region47: #{encoder_layer_fwd.2} parent=5 // pred_region
      %s241 = ssub.s32 %s13, 1
      %p242 = scmp.lt.s32.totalorder %s18, 1
      %s243 = scalar_select %p242, %s18, 1
      %s244 = smul.addr %s243, 8
      %s245 = scalar_lea.vmem %s0, %s244
      %p246 = pneg %p39
      %p247 = pneg %p36
      %p248 = pneg %p60
      %p249 = pneg %p57
      %p250 = pneg %p81
      %p251 = pneg %p78
      %p252 = pneg %p102
      %p253 = pneg %p99
      %p254 = pneg %p123
      %p255 = pneg %p120
      %p256 = pneg %p144
      %p257 = pneg %p141
      %p258 = pneg %p165
      %p259 = pneg %p162
      %p260 = pneg %p191
      %p261 = pneg %p188
      %p262 = scmp.lt.s32.totalorder %s18, 1
      %s263 = scalar_select %p262, %s18, 1
      %s264 = smul.addr %s263, 4
      %s265 = scalar_lea.vmem %s7, %s264
      %p266 = scmp.lt.s32.totalorder %s18, 1
      %s267 = scalar_select %p266, %s18, 1
      %s268 = smul.addr %s267, 8
      %s269 = scalar_lea.vmem %s0, %s268
      %p270 = scmp.lt.s32.totalorder %s18, 1
      %s271 = scalar_select %p270, %s18, 1
      %s272 = smul.addr %s271, 4
      %s273 = scalar_lea.vmem %s7, %s272
      %v275 = vld [vmem:[%s269] sm:$0xff]
      %v276 = vpack.c.bf16 %v275, %v275
      %v277 = vld [vmem:[%s1] sm:$0xf]
      %v278 = vld [vmem:[%s1 + $0x4] sm:$0xf]
      %v279 = vld [vmem:[%s1 + $0x8] sm:$0xf]
      %v280 = vld [vmem:[%s1 + $0xc] sm:$0xf]
      %v281 = vld [vmem:[%s2] sm:$0x1]
      %v283 = vlaneseq
      %v284 = vshrl.u32 %v283, 7
      %v285 = vsub.s32 0, %v284
      %v286 = vrot.slane %v281, %v285
      %v292 = vunpack.c.l.b16 %v277
      %v293 = vunpack.c.l.b16 %v278
      %v294 = vunpack.c.l.b16 %v279
      %v295 = vunpack.c.l.b16 %v280
      %v296 = vpack.c.b16 %v293, %v292
      %v297 = vpack.c.b16 %v295, %v294
      %vm300 = vcmask 261120
      %v302 = vsel %vm300, %v276, 0
      %304 = vmatprep.subr.bf16.mxu0 0
      %305 = vmatpush1.bf16.msra.mxu0 %v296
      %306 = vmatprep.subr.bf16.mxu0 0
      %307 = vmatpush1.bf16.msra.mxu0 %v297
      %308 = vmatprep.subr.bf16.mxu0 0
      %309 = vmatpush1.bf16.msra.mxu0 0
      %310 = vmatprep.subr.bf16.mxu0 0
      %311 = vmatpush1.bf16.msra.mxu0 0
      %312 = vmatprep.subr.bf16.mxu0 0
      %313 = vmatpush1.bf16.msra.mxu0 0
      %314 = vmatprep.subr.bf16.mxu0 0
      %315 = vmatpush1.bf16.msra.mxu0 0
      %316 = vmatprep.subr.bf16.mxu0 0
      %317 = vmatpush1.bf16.msra.mxu0 0
      %318 = vmatprep.subr.bf16.mxu0 0
      %319 = vmatpush1.bf16.msra.mxu0 0
      %320 = vmatprep.subr.bf16.mxu0 0
      %321 = vmatpush1.bf16.msra.mxu0 0
      %322 = vmatprep.subr.bf16.mxu0 0
      %323 = vmatpush1.bf16.msra.mxu0 0
      %324 = vmatprep.subr.bf16.mxu0 0
      %325 = vmatpush1.bf16.msra.mxu0 0
      %326 = vmatprep.subr.bf16.mxu0 0
      %327 = vmatpush1.bf16.msra.mxu0 0
      %328 = vmatprep.subr.bf16.mxu0 0
      %329 = vmatpush1.bf16.msra.mxu0 0
      %330 = vmatprep.subr.bf16.mxu0 0
      %331 = vmatpush1.bf16.msra.mxu0 0
      %332 = vmatprep.subr.bf16.mxu0 0
      %333 = vmatpush1.bf16.msra.mxu0 0
      %334 = vmatprep.subr.bf16.mxu0 0
      %335 = vmatpush1.bf16.msra.mxu0 0
      %336 = vmatprep.mubr.bf16.mxu0 0
      %337 = vmatmul.mubr.bf16.gmra.mrb[0].mxu0 %v302
      %v338 = vpop.f32.mrb[0].mxu0
      %v339 = vadd.f32 %v286, %v338
      %v340 = vpop.f32.mrb[0].mxu0
      %v341 = vpop.f32.mrb[0].mxu0
      %v342 = vpop.f32.mrb[0].mxu0
      %343 = vdwg.mxu0
      %v344 = vmul.f32 %v339, 0.35355338
      %v345 = vpack.c.bf16 %v344, %v344
      %v346 = vpack.c.bf16 %v339, %v339
      %348 = vrot.lane.b32.xlu0 %v346, 96
      %v349 = vpop.permute.xlu0 %348
      %vm350 = vcmask 64512
      %v352 = vsel %vm350, %v345, 0
      %v355 = vsel %vm350, %v349, 0
      %357 = vmatprep.subr.bf16.mxu0 0
      %358 = vmatpush1.bf16.xpose.msra.mxu0 %v355
      %359 = vmatprep.subr.bf16.mxu0 0
      %360 = vmatpush1.bf16.xpose.msra.mxu0 0
      %361 = vmatprep.subr.bf16.mxu0 0
      %362 = vmatpush1.bf16.xpose.msra.mxu0 0
      %363 = vmatprep.subr.bf16.mxu0 0
      %364 = vmatpush1.bf16.xpose.msra.mxu0 0
      %365 = vmatprep.subr.bf16.mxu0 0
      %366 = vmatpush1.bf16.xpose.msra.mxu0 0
      %367 = vmatprep.subr.bf16.mxu0 0
      %368 = vmatpush1.bf16.xpose.msra.mxu0 0
      %369 = vmatprep.subr.bf16.mxu0 0
      %370 = vmatpush1.bf16.xpose.msra.mxu0 0
      %371 = vmatprep.subr.bf16.mxu0 0
      %372 = vmatpush1.bf16.xpose.msra.mxu0 0
      %373 = vmatprep.subr.bf16.mxu0 0
      %374 = vmatpush1.bf16.xpose.msra.mxu0 0
      %375 = vmatprep.subr.bf16.mxu0 0
      %376 = vmatpush1.bf16.xpose.msra.mxu0 0
      %377 = vmatprep.subr.bf16.mxu0 0
      %378 = vmatpush1.bf16.xpose.msra.mxu0 0
      %379 = vmatprep.subr.bf16.mxu0 0
      %380 = vmatpush1.bf16.xpose.msra.mxu0 0
      %381 = vmatprep.subr.bf16.mxu0 0
      %382 = vmatpush1.bf16.xpose.msra.mxu0 0
      %383 = vmatprep.subr.bf16.mxu0 0
      %384 = vmatpush1.bf16.xpose.msra.mxu0 0
      %385 = vmatprep.subr.bf16.mxu0 0
      %386 = vmatpush1.bf16.xpose.msra.mxu0 0
      %387 = vmatprep.subr.bf16.mxu0 0
      %388 = vmatpush1.bf16.xpose.msra.mxu0 0
      %389 = vmatprep.mubr.bf16.mxu0 0
      %390 = vmatmul.mubr.bf16.gmra.mrb[0].mxu0 %v352
      %v391 = vpop.f32.mrb[0].mxu0
      %v392 = vadd.f32 0.0, %v391
      %v393 = vpop.f32.mrb[0].mxu0
      %v394 = vpop.f32.mrb[0].mxu0
      %v395 = vpop.f32.mrb[0].mxu0
      %396 = vdwg.mxu0
      %v397 = vsel %vm350, %v392, -inf
      %398 = vmax.xlane.f32.xlu0 %v397
      %v399 = vpop.xlane.xlu0 %398
      %v400 = vsub.f32 %v392, %v399
      %v401 = vmul.f32 %v400, 1.442695
      %v402 = vpow.pop %v401
      %v403 = vsel %vm350, %v402, 0.0
      %404 = vadd.xlane.f32.xlu0 %v403
      %v405 = vpop.xlane.xlu0 %404
      %v406 = vpack.c.bf16 %v402, %v402
      %407 = vrot.lane.b32.xlu0 %v346, 64
      %v408 = vpop.permute.xlu0 %407
      %v410 = vsel %vm350, %v406, 0
      %vm412 = vcmask 1043456
      %v414 = vsel %vm412, %v408, 0
      %416 = vmatprep.subr.bf16.mxu0 0
      %417 = vmatpush1.bf16.msra.mxu0 %v414
      %418 = vmatprep.subr.bf16.mxu0 0
      %419 = vmatpush1.bf16.msra.mxu0 0
      %420 = vmatprep.subr.bf16.mxu0 0
      %421 = vmatpush1.bf16.msra.mxu0 0
      %422 = vmatprep.subr.bf16.mxu0 0
      %423 = vmatpush1.bf16.msra.mxu0 0
      %424 = vmatprep.subr.bf16.mxu0 0
      %425 = vmatpush1.bf16.msra.mxu0 0
      %426 = vmatprep.subr.bf16.mxu0 0
      %427 = vmatpush1.bf16.msra.mxu0 0
      %428 = vmatprep.subr.bf16.mxu0 0
      %429 = vmatpush1.bf16.msra.mxu0 0
      %430 = vmatprep.subr.bf16.mxu0 0
      %431 = vmatpush1.bf16.msra.mxu0 0
      %432 = vmatprep.subr.bf16.mxu0 0
      %433 = vmatpush1.bf16.msra.mxu0 0
      %434 = vmatprep.subr.bf16.mxu0 0
      %435 = vmatpush1.bf16.msra.mxu0 0
      %436 = vmatprep.subr.bf16.mxu0 0
      %437 = vmatpush1.bf16.msra.mxu0 0
      %438 = vmatprep.subr.bf16.mxu0 0
      %439 = vmatpush1.bf16.msra.mxu0 0
      %440 = vmatprep.subr.bf16.mxu0 0
      %441 = vmatpush1.bf16.msra.mxu0 0
      %442 = vmatprep.subr.bf16.mxu0 0
      %443 = vmatpush1.bf16.msra.mxu0 0
      %444 = vmatprep.subr.bf16.mxu0 0
      %445 = vmatpush1.bf16.msra.mxu0 0
      %446 = vmatprep.subr.bf16.mxu0 0
      %447 = vmatpush1.bf16.msra.mxu0 0
      %448 = vmatprep.mubr.bf16.mxu0 0
      %449 = vmatmul.mubr.bf16.gmra.mrb[0].mxu0 %v410
      %v450 = vpop.f32.mrb[0].mxu0
      %v451 = vadd.f32 0.0, %v450
      %v452 = vpop.f32.mrb[0].mxu0
      %v453 = vpop.f32.mrb[0].mxu0
      %v454 = vpop.f32.mrb[0].mxu0
      %455 = vdwg.mxu0
      %v456 = vrcp.pop %v405
      %v457 = vmul.f32 %v451, %v456
      %458 = vst.msk [vmem:[#allocation2] sm:$0xff] %vm350, %v457
      %460 = vrot.lane.b32.xlu0 %v345, 120
      %v461 = vpop.permute.xlu0 %460
      %462 = vrot.lane.b32.xlu0 %v346, 88
      %v463 = vpop.permute.xlu0 %462
      %v465 = vsel %vm350, %v461, 0
      %v468 = vsel %vm350, %v463, 0
      %470 = vmatprep.subr.bf16.mxu0 0
      %471 = vmatpush1.bf16.xpose.msra.mxu0 %v468
      %472 = vmatprep.subr.bf16.mxu0 0
      %473 = vmatpush1.bf16.xpose.msra.mxu0 0
      %474 = vmatprep.subr.bf16.mxu0 0
      %475 = vmatpush1.bf16.xpose.msra.mxu0 0
      %476 = vmatprep.subr.bf16.mxu0 0
      %477 = vmatpush1.bf16.xpose.msra.mxu0 0
      %478 = vmatprep.subr.bf16.mxu0 0
      %479 = vmatpush1.bf16.xpose.msra.mxu0 0
      %480 = vmatprep.subr.bf16.mxu0 0
      %481 = vmatpush1.bf16.xpose.msra.mxu0 0
      %482 = vmatprep.subr.bf16.mxu0 0
      %483 = vmatpush1.bf16.xpose.msra.mxu0 0
      %484 = vmatprep.subr.bf16.mxu0 0
      %485 = vmatpush1.bf16.xpose.msra.mxu0 0
      %486 = vmatprep.subr.bf16.mxu0 0
      %487 = vmatpush1.bf16.xpose.msra.mxu0 0
      %488 = vmatprep.subr.bf16.mxu0 0
      %489 = vmatpush1.bf16.xpose.msra.mxu0 0
      %490 = vmatprep.subr.bf16.mxu0 0
      %491 = vmatpush1.bf16.xpose.msra.mxu0 0
      %492 = vmatprep.subr.bf16.mxu0 0
      %493 = vmatpush1.bf16.xpose.msra.mxu0 0
      %494 = vmatprep.subr.bf16.mxu0 0
      %495 = vmatpush1.bf16.xpose.msra.mxu0 0
      %496 = vmatprep.subr.bf16.mxu0 0
      %497 = vmatpush1.bf16.xpose.msra.mxu0 0
      %498 = vmatprep.subr.bf16.mxu0 0
      %499 = vmatpush1.bf16.xpose.msra.mxu0 0
      %500 = vmatprep.subr.bf16.mxu0 0
      %501 = vmatpush1.bf16.xpose.msra.mxu0 0
      %502 = vmatprep.mubr.bf16.mxu0 0
      %503 = vmatmul.mubr.bf16.gmra.mrb[0].mxu0 %v465
      %v504 = vpop.f32.mrb[0].mxu0
      %v505 = vadd.f32 0.0, %v504
      %v506 = vpop.f32.mrb[0].mxu0
      %v507 = vpop.f32.mrb[0].mxu0
      %v508 = vpop.f32.mrb[0].mxu0
      %509 = vdwg.mxu0
      %v510 = vsel %vm350, %v505, -inf
      %511 = vmax.xlane.f32.xlu0 %v510
      %v512 = vpop.xlane.xlu0 %511
      %v513 = vsub.f32 %v505, %v512
      %v514 = vmul.f32 %v513, 1.442695
      %v515 = vpow.pop %v514
      %v516 = vsel %vm350, %v515, 0.0
      %517 = vadd.xlane.f32.xlu0 %v516
      %v518 = vpop.xlane.xlu0 %517
      %v519 = vpack.c.bf16 %v515, %v515
      %520 = vrot.lane.b32.xlu0 %v346, 56
      %v521 = vpop.permute.xlu0 %520
      %v523 = vsel %vm350, %v519, 0
      %v526 = vsel %vm412, %v521, 0
      %528 = vmatprep.subr.bf16.mxu0 0
      %529 = vmatpush1.bf16.msra.mxu0 %v526
      %530 = vmatprep.subr.bf16.mxu0 0
      %531 = vmatpush1.bf16.msra.mxu0 0
      %532 = vmatprep.subr.bf16.mxu0 0
      %533 = vmatpush1.bf16.msra.mxu0 0
      %534 = vmatprep.subr.bf16.mxu0 0
      %535 = vmatpush1.bf16.msra.mxu0 0
      %536 = vmatprep.subr.bf16.mxu0 0
      %537 = vmatpush1.bf16.msra.mxu0 0
      %538 = vmatprep.subr.bf16.mxu0 0
      %539 = vmatpush1.bf16.msra.mxu0 0
      %540 = vmatprep.subr.bf16.mxu0 0
      %541 = vmatpush1.bf16.msra.mxu0 0
      %542 = vmatprep.subr.bf16.mxu0 0
      %543 = vmatpush1.bf16.msra.mxu0 0
      %544 = vmatprep.subr.bf16.mxu0 0
      %545 = vmatpush1.bf16.msra.mxu0 0
      %546 = vmatprep.subr.bf16.mxu0 0
      %547 = vmatpush1.bf16.msra.mxu0 0
      %548 = vmatprep.subr.bf16.mxu0 0
      %549 = vmatpush1.bf16.msra.mxu0 0
      %550 = vmatprep.subr.bf16.mxu0 0
      %551 = vmatpush1.bf16.msra.mxu0 0
      %552 = vmatprep.subr.bf16.mxu0 0
      %553 = vmatpush1.bf16.msra.mxu0 0
      %554 = vmatprep.subr.bf16.mxu0 0
      %555 = vmatpush1.bf16.msra.mxu0 0
      %556 = vmatprep.subr.bf16.mxu0 0
      %557 = vmatpush1.bf16.msra.mxu0 0
      %558 = vmatprep.subr.bf16.mxu0 0
      %559 = vmatpush1.bf16.msra.mxu0 0
      %560 = vmatprep.mubr.bf16.mxu0 0
      %561 = vmatmul.mubr.bf16.gmra.mrb[0].mxu0 %v523
      %v562 = vpop.f32.mrb[0].mxu0
      %v563 = vadd.f32 0.0, %v562
      %v564 = vpop.f32.mrb[0].mxu0
      %v565 = vpop.f32.mrb[0].mxu0
      %v566 = vpop.f32.mrb[0].mxu0
      %567 = vdwg.mxu0
      %v568 = vrcp.pop %v518
      %v569 = vmul.f32 %v563, %v568
      %571 = vrot.lane.b32.xlu0 %v569, 8
      %v572 = vpop.permute.xlu0 %571
      %vm574 = vcmask 130112
      %575 = vst.msk [vmem:[#allocation2] sm:$0xff] %vm574, %v572
      %576 = vrot.lane.b32.xlu0 %v345, 112
      %v577 = vpop.permute.xlu0 %576
      %578 = vrot.lane.b32.xlu0 %v346, 80
      %v579 = vpop.permute.xlu0 %578
      %v581 = vsel %vm350, %v577, 0
      %v584 = vsel %vm350, %v579, 0
      %586 = vmatprep.subr.bf16.mxu0 0
      %587 = vmatpush1.bf16.xpose.msra.mxu0 %v584
      %588 = vmatprep.subr.bf16.mxu0 0
      %589 = vmatpush1.bf16.xpose.msra.mxu0 0
      %590 = vmatprep.subr.bf16.mxu0 0
      %591 = vmatpush1.bf16.xpose.msra.mxu0 0
      %592 = vmatprep.subr.bf16.mxu0 0
      %593 = vmatpush1.bf16.xpose.msra.mxu0 0
      %594 = vmatprep.subr.bf16.mxu0 0
      %595 = vmatpush1.bf16.xpose.msra.mxu0 0
      %596 = vmatprep.subr.bf16.mxu0 0
      %597 = vmatpush1.bf16.xpose.msra.mxu0 0
      %598 = vmatprep.subr.bf16.mxu0 0
      %599 = vmatpush1.bf16.xpose.msra.mxu0 0
      %600 = vmatprep.subr.bf16.mxu0 0
      %601 = vmatpush1.bf16.xpose.msra.mxu0 0
      %602 = vmatprep.subr.bf16.mxu0 0
      %603 = vmatpush1.bf16.xpose.msra.mxu0 0
      %604 = vmatprep.subr.bf16.mxu0 0
      %605 = vmatpush1.bf16.xpose.msra.mxu0 0
      %606 = vmatprep.subr.bf16.mxu0 0
      %607 = vmatpush1.bf16.xpose.msra.mxu0 0
      %608 = vmatprep.subr.bf16.mxu0 0
      %609 = vmatpush1.bf16.xpose.msra.mxu0 0
      %610 = vmatprep.subr.bf16.mxu0 0
      %611 = vmatpush1.bf16.xpose.msra.mxu0 0
      %612 = vmatprep.subr.bf16.mxu0 0
      %613 = vmatpush1.bf16.xpose.msra.mxu0 0
      %614 = vmatprep.subr.bf16.mxu0 0
      %615 = vmatpush1.bf16.xpose.msra.mxu0 0
      %616 = vmatprep.subr.bf16.mxu0 0
      %617 = vmatpush1.bf16.xpose.msra.mxu0 0
      %618 = vmatprep.mubr.bf16.mxu0 0
      %619 = vmatmul.mubr.bf16.gmra.mrb[0].mxu0 %v581
      %v620 = vpop.f32.mrb[0].mxu0
      %v621 = vadd.f32 0.0, %v620
      %v622 = vpop.f32.mrb[0].mxu0
      %v623 = vpop.f32.mrb[0].mxu0
      %v624 = vpop.f32.mrb[0].mxu0
      %625 = vdwg.mxu0
      %v626 = vsel %vm350, %v621, -inf
      %627 = vmax.xlane.f32.xlu0 %v626
      %v628 = vpop.xlane.xlu0 %627
      %v629 = vsub.f32 %v621, %v628
      %v630 = vmul.f32 %v629, 1.442695
      %v631 = vpow.pop %v630
      %v632 = vsel %vm350, %v631, 0.0
      %633 = vadd.xlane.f32.xlu0 %v632
      %v634 = vpop.xlane.xlu0 %633
      %v635 = vpack.c.bf16 %v631, %v631
      %636 = vrot.lane.b32.xlu0 %v346, 48
      %v637 = vpop.permute.xlu0 %636
      %v639 = vsel %vm350, %v635, 0
      %v642 = vsel %vm412, %v637, 0
      %644 = vmatprep.subr.bf16.mxu0 0
      %645 = vmatpush1.bf16.msra.mxu0 %v642
      %646 = vmatprep.subr.bf16.mxu0 0
      %647 = vmatpush1.bf16.msra.mxu0 0
      %648 = vmatprep.subr.bf16.mxu0 0
      %649 = vmatpush1.bf16.msra.mxu0 0
      %650 = vmatprep.subr.bf16.mxu0 0
      %651 = vmatpush1.bf16.msra.mxu0 0
      %652 = vmatprep.subr.bf16.mxu0 0
      %653 = vmatpush1.bf16.msra.mxu0 0
      %654 = vmatprep.subr.bf16.mxu0 0
      %655 = vmatpush1.bf16.msra.mxu0 0
      %656 = vmatprep.subr.bf16.mxu0 0
      %657 = vmatpush1.bf16.msra.mxu0 0
      %658 = vmatprep.subr.bf16.mxu0 0
      %659 = vmatpush1.bf16.msra.mxu0 0
      %660 = vmatprep.subr.bf16.mxu0 0
      %661 = vmatpush1.bf16.msra.mxu0 0
      %662 = vmatprep.subr.bf16.mxu0 0
      %663 = vmatpush1.bf16.msra.mxu0 0
      %664 = vmatprep.subr.bf16.mxu0 0
      %665 = vmatpush1.bf16.msra.mxu0 0
      %666 = vmatprep.subr.bf16.mxu0 0
      %667 = vmatpush1.bf16.msra.mxu0 0
      %668 = vmatprep.subr.bf16.mxu0 0
      %669 = vmatpush1.bf16.msra.mxu0 0
      %670 = vmatprep.subr.bf16.mxu0 0
      %671 = vmatpush1.bf16.msra.mxu0 0
      %672 = vmatprep.subr.bf16.mxu0 0
      %673 = vmatpush1.bf16.msra.mxu0 0
      %674 = vmatprep.subr.bf16.mxu0 0
      %675 = vmatpush1.bf16.msra.mxu0 0
      %676 = vmatprep.mubr.bf16.mxu0 0
      %677 = vmatmul.mubr.bf16.gmra.mrb[0].mxu0 %v639
      %v678 = vpop.f32.mrb[0].mxu0
      %v679 = vadd.f32 0.0, %v678
      %v680 = vpop.f32.mrb[0].mxu0
      %v681 = vpop.f32.mrb[0].mxu0
      %v682 = vpop.f32.mrb[0].mxu0
      %683 = vdwg.mxu0
      %v684 = vrcp.pop %v634
      %v685 = vmul.f32 %v679, %v684
      %687 = vrot.lane.b32.xlu0 %v685, 16
      %v688 = vpop.permute.xlu0 %687
      %vm690 = vcmask 195712
      %691 = vst.msk [vmem:[#allocation2] sm:$0xff] %vm690, %v688
      %692 = vrot.lane.b32.xlu0 %v345, 104
      %v693 = vpop.permute.xlu0 %692
      %694 = vrot.lane.b32.xlu0 %v346, 72
      %v695 = vpop.permute.xlu0 %694
      %v697 = vsel %vm350, %v693, 0
      %v700 = vsel %vm350, %v695, 0
      %702 = vmatprep.subr.bf16.mxu0 0
      %703 = vmatpush1.bf16.xpose.msra.mxu0 %v700
      %704 = vmatprep.subr.bf16.mxu0 0
      %705 = vmatpush1.bf16.xpose.msra.mxu0 0
      %706 = vmatprep.subr.bf16.mxu0 0
      %707 = vmatpush1.bf16.xpose.msra.mxu0 0
      %708 = vmatprep.subr.bf16.mxu0 0
      %709 = vmatpush1.bf16.xpose.msra.mxu0 0
      %710 = vmatprep.subr.bf16.mxu0 0
      %711 = vmatpush1.bf16.xpose.msra.mxu0 0
      %712 = vmatprep.subr.bf16.mxu0 0
      %713 = vmatpush1.bf16.xpose.msra.mxu0 0
      %714 = vmatprep.subr.bf16.mxu0 0
      %715 = vmatpush1.bf16.xpose.msra.mxu0 0
      %716 = vmatprep.subr.bf16.mxu0 0
      %717 = vmatpush1.bf16.xpose.msra.mxu0 0
      %718 = vmatprep.subr.bf16.mxu0 0
      %719 = vmatpush1.bf16.xpose.msra.mxu0 0
      %720 = vmatprep.subr.bf16.mxu0 0
      %721 = vmatpush1.bf16.xpose.msra.mxu0 0
      %722 = vmatprep.subr.bf16.mxu0 0
      %723 = vmatpush1.bf16.xpose.msra.mxu0 0
      %724 = vmatprep.subr.bf16.mxu0 0
      %725 = vmatpush1.bf16.xpose.msra.mxu0 0
      %726 = vmatprep.subr.bf16.mxu0 0
      %727 = vmatpush1.bf16.xpose.msra.mxu0 0
      %728 = vmatprep.subr.bf16.mxu0 0
      %729 = vmatpush1.bf16.xpose.msra.mxu0 0
      %730 = vmatprep.subr.bf16.mxu0 0
      %731 = vmatpush1.bf16.xpose.msra.mxu0 0
      %732 = vmatprep.subr.bf16.mxu0 0
      %733 = vmatpush1.bf16.xpose.msra.mxu0 0
      %734 = vmatprep.mubr.bf16.mxu0 0
      %735 = vmatmul.mubr.bf16.gmra.mrb[0].mxu0 %v697
      %v736 = vpop.f32.mrb[0].mxu0
      %v737 = vadd.f32 0.0, %v736
      %v738 = vpop.f32.mrb[0].mxu0
      %v739 = vpop.f32.mrb[0].mxu0
      %v740 = vpop.f32.mrb[0].mxu0
      %741 = vdwg.mxu0
      %v742 = vsel %vm350, %v737, -inf
      %743 = vmax.xlane.f32.xlu0 %v742
      %v744 = vpop.xlane.xlu0 %743
      %v745 = vsub.f32 %v737, %v744
      %v746 = vmul.f32 %v745, 1.442695
      %v747 = vpow.pop %v746
      %v748 = vsel %vm350, %v747, 0.0
      %749 = vadd.xlane.f32.xlu0 %v748
      %v750 = vpop.xlane.xlu0 %749
      %v751 = vpack.c.bf16 %v747, %v747
      %752 = vrot.lane.b32.xlu0 %v346, 40
      %v753 = vpop.permute.xlu0 %752
      %v755 = vsel %vm350, %v751, 0
      %v758 = vsel %vm412, %v753, 0
      %760 = vmatprep.subr.bf16.mxu0 0
      %761 = vmatpush1.bf16.msra.mxu0 %v758
      %762 = vmatprep.subr.bf16.mxu0 0
      %763 = vmatpush1.bf16.msra.mxu0 0
      %764 = vmatprep.subr.bf16.mxu0 0
      %765 = vmatpush1.bf16.msra.mxu0 0
      %766 = vmatprep.subr.bf16.mxu0 0
      %767 = vmatpush1.bf16.msra.mxu0 0
      %768 = vmatprep.subr.bf16.mxu0 0
      %769 = vmatpush1.bf16.msra.mxu0 0
      %770 = vmatprep.subr.bf16.mxu0 0
      %771 = vmatpush1.bf16.msra.mxu0 0
      %772 = vmatprep.subr.bf16.mxu0 0
      %773 = vmatpush1.bf16.msra.mxu0 0
      %774 = vmatprep.subr.bf16.mxu0 0
      %775 = vmatpush1.bf16.msra.mxu0 0
      %776 = vmatprep.subr.bf16.mxu0 0
      %777 = vmatpush1.bf16.msra.mxu0 0
      %778 = vmatprep.subr.bf16.mxu0 0
      %779 = vmatpush1.bf16.msra.mxu0 0
      %780 = vmatprep.subr.bf16.mxu0 0
      %781 = vmatpush1.bf16.msra.mxu0 0
      %782 = vmatprep.subr.bf16.mxu0 0
      %783 = vmatpush1.bf16.msra.mxu0 0
      %784 = vmatprep.subr.bf16.mxu0 0
      %785 = vmatpush1.bf16.msra.mxu0 0
      %786 = vmatprep.subr.bf16.mxu0 0
      %787 = vmatpush1.bf16.msra.mxu0 0
      %788 = vmatprep.subr.bf16.mxu0 0
      %789 = vmatpush1.bf16.msra.mxu0 0
      %790 = vmatprep.subr.bf16.mxu0 0
      %791 = vmatpush1.bf16.msra.mxu0 0
      %792 = vmatprep.mubr.bf16.mxu0 0
      %793 = vmatmul.mubr.bf16.gmra.mrb[0].mxu0 %v755
      %v794 = vpop.f32.mrb[0].mxu0
      %v795 = vadd.f32 0.0, %v794
      %v796 = vpop.f32.mrb[0].mxu0
      %v797 = vpop.f32.mrb[0].mxu0
      %v798 = vpop.f32.mrb[0].mxu0
      %799 = vdwg.mxu0
      %v800 = vrcp.pop %v750
      %v801 = vmul.f32 %v795, %v800
      %803 = vrot.lane.b32.xlu0 %v801, 24
      %v804 = vpop.permute.xlu0 %803
      %vm806 = vcmask 261312
      %807 = vst.msk [vmem:[#allocation2] sm:$0xff] %vm806, %v804
      %v808 = vld [vmem:[#allocation2] sm:$0xff]
      %v809 = vpack.c.bf16 %v808, %v808
      %v810 = vld [vmem:[%s3] sm:$0xf]
      %v811 = vld [vmem:[%s3 + $0x4] sm:$0xf]
      %v812 = vld [vmem:[%s3 + $0x8] sm:$0xf]
      %v813 = vld [vmem:[%s3 + $0xc] sm:$0xf]
      %v814 = vld [vmem:[%s4] sm:$0x1]
      %v816 = vlaneseq
      %v817 = vshrl.u32 %v816, 7
      %v818 = vsub.s32 0, %v817
      %v819 = vrot.slane %v814, %v818
      %v825 = vunpack.c.l.b16 %v810
      %v826 = vunpack.c.l.b16 %v811
      %v827 = vunpack.c.l.b16 %v812
      %v828 = vunpack.c.l.b16 %v813
      %v829 = vpack.c.b16 %v826, %v825
      %v830 = vpack.c.b16 %v828, %v827
      %v834 = vsel %vm300, %v809, 0
      %836 = vmatprep.subr.bf16.mxu0 0
      %837 = vmatpush1.bf16.msra.mxu0 %v829
      %838 = vmatprep.subr.bf16.mxu0 0
      %839 = vmatpush1.bf16.msra.mxu0 %v830
      %840 = vmatprep.subr.bf16.mxu0 0
      %841 = vmatpush1.bf16.msra.mxu0 0
      %842 = vmatprep.subr.bf16.mxu0 0
      %843 = vmatpush1.bf16.msra.mxu0 0
      %844 = vmatprep.subr.bf16.mxu0 0
      %845 = vmatpush1.bf16.msra.mxu0 0
      %846 = vmatprep.subr.bf16.mxu0 0
      %847 = vmatpush1.bf16.msra.mxu0 0
      %848 = vmatprep.subr.bf16.mxu0 0
      %849 = vmatpush1.bf16.msra.mxu0 0
      %850 = vmatprep.subr.bf16.mxu0 0
      %851 = vmatpush1.bf16.msra.mxu0 0
      %852 = vmatprep.subr.bf16.mxu0 0
      %853 = vmatpush1.bf16.msra.mxu0 0
      %854 = vmatprep.subr.bf16.mxu0 0
      %855 = vmatpush1.bf16.msra.mxu0 0
      %856 = vmatprep.subr.bf16.mxu0 0
      %857 = vmatpush1.bf16.msra.mxu0 0
      %858 = vmatprep.subr.bf16.mxu0 0
      %859 = vmatpush1.bf16.msra.mxu0 0
      %860 = vmatprep.subr.bf16.mxu0 0
      %861 = vmatpush1.bf16.msra.mxu0 0
      %862 = vmatprep.subr.bf16.mxu0 0
      %863 = vmatpush1.bf16.msra.mxu0 0
      %864 = vmatprep.subr.bf16.mxu0 0
      %865 = vmatpush1.bf16.msra.mxu0 0
      %866 = vmatprep.subr.bf16.mxu0 0
      %867 = vmatpush1.bf16.msra.mxu0 0
      %868 = vmatprep.mubr.bf16.mxu0 0
      %869 = vmatmul.mubr.bf16.gmra.mrb[0].mxu0 %v834
      %v870 = vpop.f32.mrb[0].mxu0
      %v871 = vadd.f32 %v819, %v870
      %v872 = vpop.f32.mrb[0].mxu0
      %v873 = vpop.f32.mrb[0].mxu0
      %v874 = vpop.f32.mrb[0].mxu0
      %875 = vdwg.mxu0
      %v876 = vadd.f32 %v275, %v871
      %v877 = vsel %vm300, %v876, 0.0
      %878 = vadd.xlane.f32.xlu0 %v877
      %v879 = vpop.xlane.xlu0 %878
      %v880 = vrcp.pop 32.0
      %v881 = vmul.f32 %v879, %v880
      %v882 = vsub.f32 %v876, %v881
      %v883 = vmul.f32 %v882, %v882
      %v884 = vsel %vm300, %v883, 0.0
      %885 = vadd.xlane.f32.xlu0 %v884
      %v886 = vpop.xlane.xlu0 %885
      %v887 = vmul.f32 %v886, %v880
      %v888 = vadd.f32 %v887, 1e-05
      %v889 = vrsqrt.pop %v888
      %v890 = vmul.f32 %v882, %v889
      %v891 = vld [vmem:[%s5] sm:$0x1]
      %v893 = vlaneseq
      %v894 = vshrl.u32 %v893, 7
      %v895 = vsub.s32 0, %v894
      %v896 = vrot.slane %v891, %v895
      %v898 = vmul.f32 %v890, %v896
      %v899 = vld [vmem:[%s6] sm:$0x1]
      %v901 = vlaneseq
      %v902 = vshrl.u32 %v901, 7
      %v903 = vsub.s32 0, %v902
      %v904 = vrot.slane %v899, %v903
      %v906 = vadd.f32 %v898, %v904
      %v907 = vpack.c.bf16 %v906, %v906
      %vm908 = vcmask 257024
      %909 = vst.msk [vmem:[%s273] sm:$0xf] %vm908, %v907
      %p910 = scmp.lt.s32.totalorder %s18, 1
      %s911 = scalar_select %p910, %s18, 1
      %s912 = smul.addr %s911, 4
      %s913 = scalar_lea.vmem %s7, %s912
      // Predicated region
      $region49: #{encoder_layer_fwd.2} parent=47 // pred_check
        %p914 = pneg %p188
      $region50: #{encoder_layer_fwd.2} parent=47 // pred_check_branch
        %916 = sbr.rel (%p914) target = $region52
      $region51: #{encoder_layer_fwd.2} parent=47 // pred_region
        _
      $region52: #{encoder_layer_fwd.2} parent=47 // pred_fallthru
        _
    $region48: #{encoder_layer_fwd.2} parent=5 // pred_fallthru
      _
    %p917 = scmp.le.s32.totalorder 2, %s13
    // Predicated region
    $region53: #{encoder_layer_fwd.2} parent=5 // pred_check
      %p918 = pneg %p917
    $region54: #{encoder_layer_fwd.2} parent=5 // pred_check_branch
      %920 = sbr.rel (%p918) target = $region56
    $region55: #{encoder_layer_fwd.2} parent=5 // pred_region
      %s921 = ssub.s32 %s13, 2
      // Predicated region
      $region57: #{encoder_layer_fwd.2} parent=55 // pred_check
        %p922 = pneg %p194
      $region58: #{encoder_layer_fwd.2} parent=55 // pred_check_branch
        %924 = sbr.rel (%p922) target = $region60
      $region59: #{encoder_layer_fwd.2} parent=55 // pred_region
        %p925 = scmp.lt.s32.totalorder %s19, 1
        %s926 = scalar_select %p925, %s19, 1
        %s927 = smul.addr %s926, 4
        %s928 = scalar_lea.vmem %s7, %s927
      $region60: #{encoder_layer_fwd.2} parent=55 // pred_fallthru
        _
    $region56: #{encoder_layer_fwd.2} parent=5 // pred_fallthru
      _
  $region6: #{encoder_layer_fwd.2} parent=0 // loop_footer
    %s17 = sadd.s32 1, %s13
  $region7: #{encoder_layer_fwd.2} parent=0 // loop_footer_branch
    %12 = sbr.rel target = $region3
  $region8: #{encoder_layer_fwd.2} parent=0 // loop_exit
    _

</llo_original>
